<compile_context>
chip_gen: v7x
topology: tpu7x:2x2x1
jax: 0.10.0
libtpu: 0.0.40
codegen_flags: <defaults>
</compile_context>

<pallas_src>
import math
import jax
import jax.numpy as jnp
from jax.experimental import pallas as pl
from jax.experimental.pallas import tpu as pltpu

LOG2 = math.log(2.0)
CUTOFF = 5.0          # CosineCutoff radius
LANE = 128            # lane width -> feature-dim padding target
SUB = 8               # sublane width -> atom/neighbor-dim padding target


def _ssp(x):
    # shifted softplus: ln(0.5*exp(x) + 0.5) = softplus(x) - ln(2)
    return jax.nn.softplus(x) - LOG2


def _round_up(n, m):
    return ((n + m - 1) // m) * m


def _pad_axis(a, axis, new_size):
    pad = new_size - a.shape[axis]
    if pad == 0:
        return a
    widths = [(0, 0)] * a.ndim
    widths[axis] = (0, pad)
    return jnp.pad(a, widths)


def _vmem_budget_and_multicore():
    """Generation-aware usable-VMEM budget and dual-TensorCore flag (v7x)."""
    cap = 64 << 20
    try:
        cap = int(pltpu.get_tpu_info().vmem_capacity_bytes)
    except Exception:
        pass
    kind = ""
    try:
        kind = jax.devices()[0].device_kind.lower()
    except Exception:
        pass
    multi_core = "v7" in kind
    # v5e/v6e (128 MiB physical): allow up to ~100 MiB; always leave ~16 MiB headroom.
    budget = max(32 << 20, min(cap - (16 << 20), 100 << 20))
    if multi_core:
        budget = min(budget, 48 << 20)   # v7x: 64 MiB per TensorCore minus headroom
    return budget, multi_core


def _choose_tb(batch, multi_core, budget, step_bytes):
    """Largest molecules-per-step whose estimated VMEM fits the budget.
    Keep >=2 grid steps only on dual-TensorCore chips (v7x) so both cores get work."""
    divs = [d for d in range(1, batch + 1) if batch % d == 0]
    cand = divs
    if multi_core:
        two = [d for d in divs if batch // d >= 2]
        if two:
            cand = two
    fit = [d for d in cand if step_bytes(d) <= budget]
    # TODO(synk): if even TB=1 overflows (a single very large molecule), switch to a
    #             scalar-prefetch / DMA row gather instead of the one-hot matmul.
    return max(fit) if fit else min(cand)


def cfconv(x, f_ij, r_ij, neighbors, pairwise_mask, params, cutoff=CUTOFF,
           compute_dtype=jnp.bfloat16):
    B, A, n_in = x.shape
    NBH = neighbors.shape[2]
    NB = f_ij.shape[3]
    F = params["wf1"].shape[1]
    n_out = params["wout"].shape[1]
    out_dtype = x.dtype
    cd = jnp.dtype(compute_dtype)
    cd_sz = cd.itemsize
    out_sz = jnp.dtype(out_dtype).itemsize
    is_bf16 = (cd == jnp.dtype(jnp.bfloat16))

    # padded sizes: feature dims -> 128-lane multiples, atom/neighbor dims -> 8-multiples
    NIP, NBP, FP, NOP = (_round_up(d, LANE) for d in (n_in, NB, F, n_out))
    A_pad, NBH_pad = _round_up(A, SUB), _round_up(NBH, SUB)
    P_mol = A_pad * NBH_pad
    assert A_pad < (1 << 16), "neighbor indices are packed into 16 bits"

    # ---- CosineCutoff * pairwise_mask as a single weighting array (wrapper glue) ----------
    C = 0.5 * (jnp.cos(r_ij * (jnp.pi / cutoff)) + 1.0) * (r_ij < cutoff).astype(jnp.float32)
    cm = C * pairwise_mask

    # ---- pad + flatten pair axes in the wrapper (free XLA reshapes) ------------------------
    x_p = _pad_axis(_pad_axis(x, 1, A_pad), 2, NIP)
    f_p = _pad_axis(_pad_axis(_pad_axis(f_ij, 1, A_pad), 2, NBH_pad), 3, NBP)
    cm_p = _pad_axis(_pad_axis(cm, 1, A_pad), 2, NBH_pad)            # zero weight on padding
    nbh_p = _pad_axis(_pad_axis(neighbors.astype(jnp.int32), 1, A_pad), 2, NBH_pad)

    # pack local neighbor index (high 16 bits) with bf16 cutoff*mask weight (low 16 bits)
    cm_bits = jax.lax.bitcast_convert_type(cm_p.astype(jnp.bfloat16),
                                           jnp.uint16).astype(jnp.uint32)
    packed = (nbh_p.astype(jnp.uint32) << 16) | cm_bits

    x_flat = x_p.reshape(B * A_pad, NIP).astype(cd)
    f_flat = f_p.reshape(B * P_mol, NBP).astype(cd)
    pk_flat = packed.reshape(B * P_mol, 1)

    # ---- zero-padded weights in compute dtype; biases stay f32 (added to f32 accumulators) --
    w_in2f = _pad_axis(_pad_axis(params["w_in2f"], 0, NIP), 1, FP).astype(cd)
    wf1 = _pad_axis(_pad_axis(params["wf1"], 0, NBP), 1, FP).astype(cd)
    wf2 = _pad_axis(_pad_axis(params["wf2"], 0, FP), 1, FP).astype(cd)
    wout = _pad_axis(_pad_axis(params["wout"], 0, FP), 1, NOP).astype(cd)
    bf1 = _pad_axis(params["bf1"], 1, FP).astype(jnp.float32)
    bf2 = _pad_axis(params["bf2"], 1, FP).astype(jnp.float32)
    bout = _pad_axis(params["bout"], 1, NOP).astype(jnp.float32)
    param_bytes = int(sum(a.size * a.dtype.itemsize
                          for a in (w_in2f, wf1, bf1, wf2, bf2, wout, bout)))

    # ---- per-step VMEM estimator (blocks are double-/triple-buffered; lane-1 tiles pad to
    #      128 lanes; one-hot / iota temporaries are counted lane-padded) ---------------------
    A_lane = _round_up(A_pad, LANE)
    budget, multi_core = _vmem_budget_and_multicore()

    def step_bytes(tb, n_buf_f=2):
        ta = tb * A_pad
        p = ta * NBH_pad
        blocks = (2 * ta * NIP * cd_sz              # x
                  + n_buf_f * p * NBP * cd_sz       # f_ij
                  + 2 * p * LANE * 4                # packed nbh|cm: (P,1) tiles pad to 128 lanes
                  + 2 * ta * NOP * out_sz)          # out
        interm = (p * FP * (3 * 4 + 2 * cd_sz)      # h, W, y_nbh (f32) + cd casts of h, W
                  + 2 * p * LANE * 4                # unpacked nbh / cm values ((P,1) lane-padded)
                  + p * A_lane * (4 + cd_sz)        # iota + weighted one-hot (per-molecule)
                  + ta * FP * (2 * 4 + cd_sz)       # y (f32 + cd), agg (f32)
                  + ta * NOP * 4)                   # pre-activation output
        return int(blocks + interm + param_bytes)

    TB = _choose_tb(B, multi_core, budget - (4 << 20), step_bytes)
    G = B // TB
    TA_blk = TB * A_pad
    P_blk = TB * P_mol
    n_buf_f = 3 if G >= 3 else 2                    # deeper pipelining on the big f_ij stream
    vmem_limit = int(min(budget, max(32 << 20, step_bytes(TB, n_buf_f) + (8 << 20))))

    # ---------------------------------- kernel -----------------------------------------------
    def kernel(x_ref, f_ref, pk_ref, w_in2f_ref, wf1_ref, bf1_ref,
               wf2_ref, bf2_ref, wout_ref, bout_ref, out_ref):
        # ---- filter_network: Dense(n_basis->F, ssp) -> Dense(F->F), all pair rows at once ----
        h = jnp.dot(f_ref[...], wf1_ref[...], preferred_element_type=jnp.float32) + bf1_ref[...]
        h = _ssp(h.astype(cd) if is_bf16 else h)     # bf16 softplus relieves the single EUP
        W = jnp.dot(h.astype(cd), wf2_ref[...], preferred_element_type=jnp.float32) + bf2_ref[...]
        W = W.astype(cd)                             # only a cd copy stays live through the conv

        # ---- in2f: Dense(n_in -> n_filters, no bias) ----
        y = jnp.dot(x_ref[...], w_in2f_ref[...], preferred_element_type=jnp.float32)
        y = y.astype(cd).reshape(TB, A_pad, FP)      # free view: A_pad % 8 == 0, FP % 128 == 0

        # ---- block-diagonal gather: neighbors of molecule m only index atoms of molecule m.
        #      Build a per-molecule (P_mol, A_pad) weighted one-hot (cutoff*mask folded in)
        #      and contract batched over the TB molecules of this grid step. ------------------
        pk = pk_ref[...]                                            # (P_blk, 1) uint32
        nbh = (pk >> 16).astype(jnp.int32).reshape(TB, P_mol, 1)    # local atom index
        cmw = pltpu.bitcast(pk << 16, jnp.float32)                  # bf16 weight bits -> f32 value
        cmw = cmw.astype(cd).reshape(TB, P_mol, 1)
        src = jax.lax.broadcasted_iota(jnp.int32, (TB, P_mol, A_pad), 2)
        onehot = jnp.where(nbh == src, cmw, jnp.zeros((), cd))      # (TB, P_mol, A_pad)
        y_nbh = jnp.einsum("bpa,baf->bpf", onehot, y,
                           preferred_element_type=jnp.float32)      # (TB, P_mol, FP)
        # TODO(synk): for very large molecules (A_pad in the hundreds+) replace this
        #             O(A^2*NBH*F) one-hot contraction with a scalar-prefetch / DMA row gather.

        # ---- continuous-filter conv + neighbor-axis sum (free regroups: NBH_pad % 8 == 0) ----
        prod = y_nbh.reshape(TA_blk, NBH_pad, FP) * W.reshape(TA_blk, NBH_pad, FP)
        agg = prod.sum(axis=1)                                      # (TA_blk, FP), f32

        # ---- f2out: Dense(F -> n_out, bias) + shifted softplus --------------------------------
        out = jnp.dot(agg.astype(cd), wout_ref[...],
                      preferred_element_type=jnp.float32) + bout_ref[...]
        out_ref[...] = _ssp(out).astype(out_ref.dtype)

    # ---------------------------------- specs ------------------------------------------------
    def bspec(shape, **kw):   # per-grid-step block (first axis blocked over molecules)
        nd = len(shape)
        return pl.BlockSpec(shape, lambda g, _nd=nd: (g,) + (0,) * (_nd - 1), **kw)

    def pspec(shape):         # parameter: same (full) block every grid step
        nd = len(shape)
        return pl.BlockSpec(shape, lambda g, _nd=nd: (0,) * _nd)

    f_kw = {"pipeline_mode": pl.Buffered(n_buf_f)} if n_buf_f > 2 else {}

    grid_spec = pltpu.PrefetchScalarGridSpec(
        num_scalar_prefetch=0,
        grid=(G,),
        in_specs=[
            bspec((TA_blk, NIP)),              # x (flattened atoms)
            bspec((P_blk, NBP), **f_kw),       # f_ij (flattened pairs)
            bspec((P_blk, 1)),                 # packed neighbor idx | cutoff*mask (uint32)
            pspec(w_in2f.shape), pspec(wf1.shape), pspec(bf1.shape),
            pspec(wf2.shape), pspec(bf2.shape), pspec(wout.shape), pspec(bout.shape),
        ],
        out_specs=bspec((TA_blk, NOP)),
    )

    # ---- advisory cost estimate for XLA scheduling (gather now costs A_pad, not TA_blk) ------
    P_total = B * P_mol
    flops = int(2 * P_total * (NBP * FP + FP * FP + A_pad * FP)
                + 2 * B * A_pad * (NIP * FP + FP * NOP)
                + 3 * P_total * FP)
    transcendentals = int(2 * (P_total * FP + B * A_pad * NOP))
    kernel_args = (x_flat, f_flat, pk_flat, w_in2f, wf1, bf1, wf2, bf2, wout, bout)
    bytes_accessed = int(sum(a.size * a.dtype.itemsize for a in kernel_args)
                         + B * A_pad * NOP * out_sz)
    cost = pl.CostEstimate(flops=flops, transcendentals=transcendentals,
                           bytes_accessed=bytes_accessed)

    out_flat = pl.pallas_call(
        kernel,
        out_shape=jax.ShapeDtypeStruct((B * A_pad, NOP), out_dtype),
        grid_spec=grid_spec,
        compiler_params=pltpu.CompilerParams(
            dimension_semantics=("parallel",),
            vmem_limit_bytes=vmem_limit),
        cost_estimate=cost,
    )(*kernel_args)

    # slice the lane/atom padding back off
    return out_flat.reshape(B, A_pad, NOP)[:, :A, :n_out]


def cfconv_reference(x, f_ij, r_ij, neighbors, pairwise_mask, params, cutoff=CUTOFF,
                     compute_dtype=jnp.float32):
    """Pure-JAX reference matching the PyTorch forward semantics, mirroring the kernel's
    compute-dtype casts (f32 accumulation) so both the f32 and bf16 paths validate tightly."""
    cd = jnp.dtype(compute_dtype)
    pf = jnp.float32
    is_bf16 = (cd == jnp.dtype(jnp.bfloat16))
    h = jnp.einsum("bank,kf->banf", f_ij.astype(cd), params["wf1"].astype(cd),
                   preferred_element_type=pf) + params["bf1"]
    h = _ssp(h.astype(cd) if is_bf16 else h)
    W = jnp.einsum("banf,fg->bang", h.astype(cd), params["wf2"].astype(cd),
                   preferred_element_type=pf) + params["bf2"]
    W = W.astype(cd).astype(pf)
    C = 0.5 * (jnp.cos(r_ij * (jnp.pi / cutoff)) + 1.0) * (r_ij < cutoff).astype(pf)
    # kernel ships cutoff*mask as bf16 (packed with the neighbor index) -> mirror the rounding
    cm = (C * pairwise_mask).astype(jnp.bfloat16).astype(cd).astype(pf)
    y = jnp.einsum("bai,if->baf", x.astype(cd), params["w_in2f"].astype(cd),
                   preferred_element_type=pf)
    y_nbh = jax.vmap(lambda yb, nb: yb[nb])(y.astype(cd).astype(pf), neighbors)
    agg = jnp.sum(y_nbh * cm[..., None] * W, axis=2)       # Aggregate(axis=2, mean=False)
    out = jnp.einsum("baf,fo->bao", agg.astype(cd), params["wout"].astype(cd),
                     preferred_element_type=pf) + params["bout"]
    return _ssp(out)


def init_params(key, n_in, n_basis, n_filters, n_out):
    ks = jax.random.split(key, 6)

    def dense_w(k, fin, fout):
        scale = math.sqrt(2.0 / (fin + fout))
        return (scale * jax.random.normal(k, (fin, fout))).astype(jnp.float32)

    return {
        "w_in2f": dense_w(ks[0], n_in, n_filters),                        # in2f (no bias)
        "wf1": dense_w(ks[1], n_basis, n_filters),                        # filter_network[0]
        "bf1": (0.01 * jax.random.normal(ks[2], (1, n_filters))).astype(jnp.float32),
        "wf2": dense_w(ks[3], n_filters, n_filters),                      # filter_network[1]
        "bf2": jnp.zeros((1, n_filters), jnp.float32),
        "wout": dense_w(ks[4], n_filters, n_out),                         # f2out
        "bout": (0.01 * jax.random.normal(ks[5], (1, n_out))).astype(jnp.float32),
    }


if __name__ == "__main__":
    B, A, NBH = 2, 8, 8            # batch, atoms, neighbors
    n_in, n_basis, n_filters, n_out = 32, 16, 32, 32

    key = jax.random.PRNGKey(0)
    k_x, k_r, k_f, k_n, k_m, k_p = jax.random.split(key, 6)

    x = jax.random.normal(k_x, (B, A, n_in), jnp.float32)
    r_ij = jax.random.uniform(k_r, (B, A, NBH), jnp.float32, 0.5, 7.0)
    f_ij = jax.random.normal(k_f, (B, A, NBH, n_basis), jnp.float32)
    neighbors = jax.random.randint(k_n, (B, A, NBH), 0, A, jnp.int32)
    pairwise_mask = (jax.random.uniform(k_m, (B, A, NBH)) > 0.2).astype(jnp.float32)

    params = init_params(k_p, n_in, n_basis, n_filters, n_out)

    # f32 compute path: matches the f32 reference tightly.
    out32 = jax.block_until_ready(
        cfconv(x, f_ij, r_ij, neighbors, pairwise_mask, params,
               compute_dtype=jnp.float32))
    ref32 = cfconv_reference(x, f_ij, r_ij, neighbors, pairwise_mask, params,
                             compute_dtype=jnp.float32)
    assert out32.shape == (B, A, n_out)
    assert jnp.allclose(out32, ref32, rtol=3e-3, atol=3e-3), "f32 mismatch vs reference"

    # bf16 MXU path (perf config for v6e/v7x): compare against a reference that applies
    # the same bf16 operand casts with f32 accumulation.
    out_bf = jax.block_until_ready(
        cfconv(x, f_ij, r_ij, neighbors, pairwise_mask, params,
               compute_dtype=jnp.bfloat16))
    ref_bf = cfconv_reference(x, f_ij, r_ij, neighbors, pairwise_mask, params,
                              compute_dtype=jnp.bfloat16)
    assert out_bf.shape == (B, A, n_out)
    assert jnp.allclose(out_bf, ref_bf, rtol=2e-2, atol=2e-2), "bf16 mismatch vs reference"

    print("KERNEL_OK")
</pallas_src>

<mosaic_0001>
module attributes {stable_mosaic.version = 11 : i64} {
  func.func @kernel(%arg0: i32, %arg1: memref<16x128xf32, #tpu.memory_space<vmem>>, %arg2: memref<128x128xf32, #tpu.memory_space<vmem>>, %arg3: memref<128x1xi32, #tpu.memory_space<vmem>>, %arg4: memref<128x128xf32, #tpu.memory_space<vmem>>, %arg5: memref<128x128xf32, #tpu.memory_space<vmem>>, %arg6: memref<1x128xf32, #tpu.memory_space<vmem>>, %arg7: memref<128x128xf32, #tpu.memory_space<vmem>>, %arg8: memref<1x128xf32, #tpu.memory_space<vmem>>, %arg9: memref<128x128xf32, #tpu.memory_space<vmem>>, %arg10: memref<1x128xf32, #tpu.memory_space<vmem>>, %arg11: memref<16x128xf32, #tpu.memory_space<vmem>>) attributes {dimension_semantics = [#tpu.dimension_semantics<parallel>], iteration_bounds = array<i64: 1>, scalar_prefetch = 0 : i64, scratch_operands = 0 : i64, tpu.core_type = #tpu.core_type<tc>, window_params = [{transform_indices = @transform_0, window_bounds = array<i64: 16, 128>}, {transform_indices = @transform_1, window_bounds = array<i64: 128, 128>}, {transform_indices = @transform_2, window_bounds = array<i64: 128, 1>}, {pipeline_mode = #tpu.pipeline_mode<synchronous>, transform_indices = @transform_3, window_bounds = array<i64: 128, 128>}, {pipeline_mode = #tpu.pipeline_mode<synchronous>, transform_indices = @transform_4, window_bounds = array<i64: 128, 128>}, {pipeline_mode = #tpu.pipeline_mode<synchronous>, transform_indices = @transform_5, window_bounds = array<i64: 1, 128>}, {pipeline_mode = #tpu.pipeline_mode<synchronous>, transform_indices = @transform_6, window_bounds = array<i64: 128, 128>}, {pipeline_mode = #tpu.pipeline_mode<synchronous>, transform_indices = @transform_7, window_bounds = array<i64: 1, 128>}, {pipeline_mode = #tpu.pipeline_mode<synchronous>, transform_indices = @transform_8, window_bounds = array<i64: 128, 128>}, {pipeline_mode = #tpu.pipeline_mode<synchronous>, transform_indices = @transform_9, window_bounds = array<i64: 1, 128>}, {transform_indices = @transform_10, window_bounds = array<i64: 16, 128>}]} {
    %c0 = arith.constant 0 : index
    %c0_0 = arith.constant 0 : index
    %0 = vector.load %arg2[%c0, %c0_0] : memref<128x128xf32, #tpu.memory_space<vmem>>, vector<128x128xf32>
    %c0_1 = arith.constant 0 : index
    %c0_2 = arith.constant 0 : index
    %1 = vector.load %arg5[%c0_1, %c0_2] : memref<128x128xf32, #tpu.memory_space<vmem>>, vector<128x128xf32>
    %cst = arith.constant dense<0.000000e+00> : vector<128x128xf32>
    %2 = tpu.matmul %0, %1, %cst {dimension_numbers = #tpu.dot_dimension_numbers<[1], [0], [0], [1], [0, 0, 1, 1], [], []>} : vector<128x128xf32>, vector<128x128xf32>, vector<128x128xf32> -> vector<128x128xf32>
    %c0_3 = arith.constant 0 : index
    %c0_4 = arith.constant 0 : index
    %3 = vector.load %arg6[%c0_3, %c0_4] : memref<1x128xf32, #tpu.memory_space<vmem>>, vector<1x128xf32>
    %4 = vector.broadcast %3 : vector<1x128xf32> to vector<128x128xf32>
    %5 = arith.addf %2, %4 : vector<128x128xf32>
    %cst_5 = arith.constant 0.000000e+00 : f32
    %6 = vector.broadcast %cst_5 : f32 to vector<128x128xf32>
    %7 = arith.maximumf %5, %6 : vector<128x128xf32>
    %8 = vector.broadcast %cst_5 : f32 to vector<128x128xf32>
    %9 = arith.subf %5, %8 : vector<128x128xf32>
    %10 = arith.cmpf one, %9, %9 : vector<128x128xf32>
    %11 = vector.broadcast %cst_5 : f32 to vector<128x128xf32>
    %12 = arith.addf %5, %11 : vector<128x128xf32>
    %13 = math.absf %9 : vector<128x128xf32>
    %cst_6 = arith.constant 0.000000e+00 : f32
    %14 = vector.broadcast %cst_6 : f32 to vector<128x128xf32>
    %15 = arith.subf %14, %13 : vector<128x128xf32>
    %16 = math.exp %15 : vector<128x128xf32>
    %17 = math.log1p %16 : vector<128x128xf32>
    %18 = arith.addf %7, %17 : vector<128x128xf32>
    %19 = arith.select %10, %12, %18 : vector<128x128xi1>, vector<128x128xf32>
    %cst_7 = arith.constant 0.693147182 : f32
    %20 = vector.broadcast %cst_7 : f32 to vector<128x128xf32>
    %21 = arith.subf %19, %20 : vector<128x128xf32>
    %c0_8 = arith.constant 0 : index
    %c0_9 = arith.constant 0 : index
    %22 = vector.load %arg7[%c0_8, %c0_9] : memref<128x128xf32, #tpu.memory_space<vmem>>, vector<128x128xf32>
    %cst_10 = arith.constant dense<0.000000e+00> : vector<128x128xf32>
    %23 = tpu.matmul %21, %22, %cst_10 {dimension_numbers = #tpu.dot_dimension_numbers<[1], [0], [0], [1], [0, 0, 1, 1], [], []>} : vector<128x128xf32>, vector<128x128xf32>, vector<128x128xf32> -> vector<128x128xf32>
    %c0_11 = arith.constant 0 : index
    %c0_12 = arith.constant 0 : index
    %24 = vector.load %arg8[%c0_11, %c0_12] : memref<1x128xf32, #tpu.memory_space<vmem>>, vector<1x128xf32>
    %25 = vector.broadcast %24 : vector<1x128xf32> to vector<128x128xf32>
    %26 = arith.addf %23, %25 : vector<128x128xf32>
    %c0_13 = arith.constant 0 : index
    %c0_14 = arith.constant 0 : index
    %27 = vector.load %arg1[%c0_13, %c0_14] : memref<16x128xf32, #tpu.memory_space<vmem>>, vector<16x128xf32>
    %c0_15 = arith.constant 0 : index
    %c0_16 = arith.constant 0 : index
    %28 = vector.load %arg4[%c0_15, %c0_16] : memref<128x128xf32, #tpu.memory_space<vmem>>, vector<128x128xf32>
    %cst_17 = arith.constant dense<0.000000e+00> : vector<16x128xf32>
    %29 = tpu.matmul %27, %28, %cst_17 {dimension_numbers = #tpu.dot_dimension_numbers<[1], [0], [0], [1], [0, 0, 1, 1], [], []>} : vector<16x128xf32>, vector<128x128xf32>, vector<16x128xf32> -> vector<16x128xf32>
    %30 = vector.shape_cast %29 : vector<16x128xf32> to vector<2x8x128xf32>
    %c0_18 = arith.constant 0 : index
    %c0_19 = arith.constant 0 : index
    %31 = vector.load %arg3[%c0_18, %c0_19] : memref<128x1xi32, #tpu.memory_space<vmem>>, vector<128x1xi32>
    %c16_i32 = arith.constant 16 : i32
    %32 = vector.broadcast %c16_i32 : i32 to vector<128x1xi32>
    %33 = arith.shrui %31, %32 : vector<128x1xi32>
    %34 = vector.shape_cast %33 : vector<128x1xi32> to vector<2x64x1xi32>
    %c16_i32_20 = arith.constant 16 : i32
    %35 = vector.broadcast %c16_i32_20 : i32 to vector<128x1xi32>
    %36 = arith.shli %31, %35 : vector<128x1xi32>
    %37 = tpu.bitcast %36 : vector<128x1xi32> -> vector<128x1xf32>
    %38 = vector.shape_cast %37 : vector<128x1xf32> to vector<2x64x1xf32>
    %39 = tpu.iota {dimensions = array<i32: 2>} : vector<2x64x8xi32>
    %40 = vector.broadcast %34 : vector<2x64x1xi32> to vector<2x64x8xi32>
    %41 = arith.cmpi eq, %40, %39 : vector<2x64x8xi32>
    %cst_21 = arith.constant 0.000000e+00 : f32
    %42 = vector.shape_cast %38 : vector<2x64x1xf32> to vector<2x64x1xf32>
    %43 = vector.broadcast %42 : vector<2x64x1xf32> to vector<2x64x8xf32>
    %44 = vector.broadcast %cst_21 : f32 to vector<2x64x8xf32>
    %45 = arith.select %41, %43, %44 : vector<2x64x8xi1>, vector<2x64x8xf32>
    "tpu.trace_start"() <{level = 10 : i32, message = "bpa,baf->bpf"}> : () -> ()
    %cst_22 = arith.constant dense<0.000000e+00> : vector<2x64x128xf32>
    %46 = tpu.matmul %45, %30, %cst_22 {dimension_numbers = #tpu.dot_dimension_numbers<[2], [1], [1], [2], [0, 0, 0, 1, 1, 2], [0], [0]>} : vector<2x64x8xf32>, vector<2x8x128xf32>, vector<2x64x128xf32> -> vector<2x64x128xf32>
    "tpu.trace_stop"() : () -> ()
    %47 = vector.shape_cast %46 : vector<2x64x128xf32> to vector<16x8x128xf32>
    %48 = vector.shape_cast %26 : vector<128x128xf32> to vector<16x8x128xf32>
    %49 = arith.mulf %47, %48 : vector<16x8x128xf32>
    %cst_23 = arith.constant dense<0.000000e+00> : vector<16x128xf32>
    %50 = vector.multi_reduction <add>, %49, %cst_23 [1] : vector<16x8x128xf32> to vector<16x128xf32>
    %c0_24 = arith.constant 0 : index
    %c0_25 = arith.constant 0 : index
    %51 = vector.load %arg9[%c0_24, %c0_25] : memref<128x128xf32, #tpu.memory_space<vmem>>, vector<128x128xf32>
    %cst_26 = arith.constant dense<0.000000e+00> : vector<16x128xf32>
    %52 = tpu.matmul %50, %51, %cst_26 {dimension_numbers = #tpu.dot_dimension_numbers<[1], [0], [0], [1], [0, 0, 1, 1], [], []>} : vector<16x128xf32>, vector<128x128xf32>, vector<16x128xf32> -> vector<16x128xf32>
    %c0_27 = arith.constant 0 : index
    %c0_28 = arith.constant 0 : index
    %53 = vector.load %arg10[%c0_27, %c0_28] : memref<1x128xf32, #tpu.memory_space<vmem>>, vector<1x128xf32>
    %54 = vector.broadcast %53 : vector<1x128xf32> to vector<16x128xf32>
    %55 = arith.addf %52, %54 : vector<16x128xf32>
    %cst_29 = arith.constant 0.000000e+00 : f32
    %56 = vector.broadcast %cst_29 : f32 to vector<16x128xf32>
    %57 = arith.maximumf %55, %56 : vector<16x128xf32>
    %58 = vector.broadcast %cst_29 : f32 to vector<16x128xf32>
    %59 = arith.subf %55, %58 : vector<16x128xf32>
    %60 = arith.cmpf one, %59, %59 : vector<16x128xf32>
    %61 = vector.broadcast %cst_29 : f32 to vector<16x128xf32>
    %62 = arith.addf %55, %61 : vector<16x128xf32>
    %63 = math.absf %59 : vector<16x128xf32>
    %cst_30 = arith.constant 0.000000e+00 : f32
    %64 = vector.broadcast %cst_30 : f32 to vector<16x128xf32>
    %65 = arith.subf %64, %63 : vector<16x128xf32>
    %66 = math.exp %65 : vector<16x128xf32>
    %67 = math.log1p %66 : vector<16x128xf32>
    %68 = arith.addf %57, %67 : vector<16x128xf32>
    %69 = arith.select %60, %62, %68 : vector<16x128xi1>, vector<16x128xf32>
    %cst_31 = arith.constant 0.693147182 : f32
    %70 = vector.broadcast %cst_31 : f32 to vector<16x128xf32>
    %71 = arith.subf %69, %70 : vector<16x128xf32>
    %c0_32 = arith.constant 0 : index
    %c0_33 = arith.constant 0 : index
    %72 = vector.load %arg11[%c0_32, %c0_33] : memref<16x128xf32, #tpu.memory_space<vmem>>, vector<16x128xf32>
    tpu.vector_store %arg11[%c0_32, %c0_33], %71 {strides = array<i32>} : memref<16x128xf32, #tpu.memory_space<vmem>>, vector<16x128xf32>,
    return
  }
  func.func @transform_0(%arg0: i32) -> (i32, i32) {
    %c0_i32 = arith.constant 0 : i32
    %c0_i32_0 = arith.constant 0 : i32
    return %arg0, %c0_i32 : i32, i32
  }
  func.func @transform_1(%arg0: i32) -> (i32, i32) {
    %c0_i32 = arith.constant 0 : i32
    %c0_i32_0 = arith.constant 0 : i32
    return %arg0, %c0_i32 : i32, i32
  }
  func.func @transform_2(%arg0: i32) -> (i32, i32) {
    %c0_i32 = arith.constant 0 : i32
    %c0_i32_0 = arith.constant 0 : i32
    return %arg0, %c0_i32 : i32, i32
  }
  func.func @transform_3(%arg0: i32) -> (i32, i32) {
    %c0_i32 = arith.constant 0 : i32
    %c0_i32_0 = arith.constant 0 : i32
    %c0_i32_1 = arith.constant 0 : i32
    return %c0_i32, %c0_i32_0 : i32, i32
  }
  func.func @transform_4(%arg0: i32) -> (i32, i32) {
    %c0_i32 = arith.constant 0 : i32
    %c0_i32_0 = arith.constant 0 : i32
    %c0_i32_1 = arith.constant 0 : i32
    return %c0_i32, %c0_i32_0 : i32, i32
  }
  func.func @transform_5(%arg0: i32) -> (i32, i32) {
    %c0_i32 = arith.constant 0 : i32
    %c0_i32_0 = arith.constant 0 : i32
    %c0_i32_1 = arith.constant 0 : i32
    return %c0_i32, %c0_i32_0 : i32, i32
  }
  func.func @transform_6(%arg0: i32) -> (i32, i32) {
    %c0_i32 = arith.constant 0 : i32
    %c0_i32_0 = arith.constant 0 : i32
    %c0_i32_1 = arith.constant 0 : i32
    return %c0_i32, %c0_i32_0 : i32, i32
  }
  func.func @transform_7(%arg0: i32) -> (i32, i32) {
    %c0_i32 = arith.constant 0 : i32
    %c0_i32_0 = arith.constant 0 : i32
    %c0_i32_1 = arith.constant 0 : i32
    return %c0_i32, %c0_i32_0 : i32, i32
  }
  func.func @transform_8(%arg0: i32) -> (i32, i32) {
    %c0_i32 = arith.constant 0 : i32
    %c0_i32_0 = arith.constant 0 : i32
    %c0_i32_1 = arith.constant 0 : i32
    return %c0_i32, %c0_i32_0 : i32, i32
  }
  func.func @transform_9(%arg0: i32) -> (i32, i32) {
    %c0_i32 = arith.constant 0 : i32
    %c0_i32_0 = arith.constant 0 : i32
    %c0_i32_1 = arith.constant 0 : i32
    return %c0_i32, %c0_i32_0 : i32, i32
  }
  func.func @transform_10(%arg0: i32) -> (i32, i32) {
    %c0_i32 = arith.constant 0 : i32
    %c0_i32_0 = arith.constant 0 : i32
    return %arg0, %c0_i32 : i32, i32
  }
}

</mosaic_0001>

<llo_original>
// kernel: tpu_custom_call.1
$region0: #{tpu_custom_call.1}
  #allocation0 [shape = 'u32[]', space=smem, size = 0x4, offset = 0x4, fixed_abs, tag = 'smem constant byte address 0x4 - core index']
  #allocation1 [shape = 'u32[144,128]{1,0:T(1,128)}', space=vmem, size = 0x12000, scoped, tag = 'internal scratch']
  %s0 = inlined_call_operand.hbm [shape: f32[16,128], index: 0, kind: input, shape index: {}]
  %s1 = inlined_call_operand.vmem [shape: f32[128,128], index: 1, kind: input, shape index: {}]
  %s2 = inlined_call_operand.vmem [shape: u32[128,1], index: 2, kind: input, shape index: {}]
  %s3 = inlined_call_operand.hbm [shape: f32[128,128], index: 3, kind: input, shape index: {}]
  %s4 = inlined_call_operand.hbm [shape: f32[128,128], index: 4, kind: input, shape index: {}]
  %s5 = inlined_call_operand.vmem [shape: f32[1,128], index: 5, kind: input, shape index: {}]
  %s6 = inlined_call_operand.hbm [shape: f32[128,128], index: 6, kind: input, shape index: {}]
  %s7 = inlined_call_operand.vmem [shape: f32[1,128], index: 7, kind: input, shape index: {}]
  %s8 = inlined_call_operand.hbm [shape: f32[128,128], index: 8, kind: input, shape index: {}]
  %s9 = inlined_call_operand.vmem [shape: f32[1,128], index: 9, kind: input, shape index: {}]
  %s10 = inlined_call_operand.hbm [shape: f32[16,128], index: 10, kind: output, shape index: {}]
  %s11 = sld [smem:[#allocation0]]
  $region70: #{tpu_custom_call.1} parent=0
    _
  %s13 = ssub.s32 1, %s11
  %s14 = scalar_select 0, %s13, %s11
  $region1: #{tpu_custom_call.1} parent=0
    #allocation2 [shape = 'u8[8192]{0}', space=vmem, size = 0x2000, scoped, tag = 'input window, operand 0, single buffered']
    #allocation3 [shape = 's32[1]{0}', space=sflag, size = 0x4, scoped, tag = 'scoped memory for tpu_custom_call.1']
    #allocation4 [shape = 's32[1]{0}', space=sflag, size = 0x4, scoped, tag = 'scoped memory for tpu_custom_call.1']
    #allocation5 [shape = 'u8[65536]{0}', space=vmem, size = 0x10000, scoped, tag = 'input window, operand 3, single buffered']
    #allocation6 [shape = 's32[1]{0}', space=sflag, size = 0x4, scoped, tag = 'scoped memory for tpu_custom_call.1']
    #allocation7 [shape = 'u8[65536]{0}', space=vmem, size = 0x10000, scoped, tag = 'input window, operand 4, single buffered']
    #allocation8 [shape = 'u8[65536]{0}', space=vmem, size = 0x10000, scoped, tag = 'input window, operand 6, single buffered']
    #allocation9 [shape = 's32[1]{0}', space=sflag, size = 0x4, scoped, tag = 'scoped memory for tpu_custom_call.1']
    #allocation10 [shape = 'u8[65536]{0}', space=vmem, size = 0x10000, scoped, tag = 'input window, operand 8, single buffered']
    #allocation11 [shape = 'u8[8192]{0}', space=vmem, size = 0x2000, scoped, tag = 'output window, operand 0, single buffered']
    %15 = vsyncpa [#allocation3], 0
    %16 = vsyncpa [#allocation6], 0
    %17 = vsyncpa [#allocation9], 0
    %18 = vsyncpa [#allocation4], 0
    // Predicated region
    $region2: #{tpu_custom_call.1} parent=1 // pred_check
      _
    $region3: #{tpu_custom_call.1} parent=1 // pred_check_branch
      %20 = sbr.rel (0) target = $region5
    $region4: #{tpu_custom_call.1} parent=1 // pred_region
      %s22 = ssub.s32 256, 256
      %23 = vsyncadd [#allocation3], %s22
      %s24 = sshll.u32 [#allocation2], 4
      %s25 = int_to_ptr.vmem [resolvable:$true] %s24
      %30 = dma.hbm_to_vmem [thread:$0]  %s0, 256, %s25, [#allocation3], 128, 128, 8
    $region5: #{tpu_custom_call.1} parent=1 // pred_fallthru
      _
    // Predicated region
    $region6: #{tpu_custom_call.1} parent=1 // pred_check
      _
    $region7: #{tpu_custom_call.1} parent=1 // pred_check_branch
      %32 = sbr.rel (0) target = $region9
    $region8: #{tpu_custom_call.1} parent=1 // pred_region
      _
    $region9: #{tpu_custom_call.1} parent=1 // pred_fallthru
      _
    // Predicated region
    $region10: #{tpu_custom_call.1} parent=1 // pred_check
      _
    $region11: #{tpu_custom_call.1} parent=1 // pred_check_branch
      %34 = sbr.rel (0) target = $region13
    $region12: #{tpu_custom_call.1} parent=1 // pred_region
      _
    $region13: #{tpu_custom_call.1} parent=1 // pred_fallthru
      _
    // Predicated region
    $region14: #{tpu_custom_call.1} parent=1 // pred_check
      _
    $region15: #{tpu_custom_call.1} parent=1 // pred_check_branch
      %36 = sbr.rel (0) target = $region17
    $region16: #{tpu_custom_call.1} parent=1 // pred_region
      %s38 = ssub.s32 2048, 2048
      %39 = vsyncadd [#allocation6], %s38
      %s40 = sshll.u32 [#allocation5], 4
      %s41 = int_to_ptr.vmem [resolvable:$true] %s40
      %46 = dma.hbm_to_vmem [thread:$0]  %s3, 2048, %s41, [#allocation6], 128, 128, 8
    $region17: #{tpu_custom_call.1} parent=1 // pred_fallthru
      _
    // Predicated region
    $region18: #{tpu_custom_call.1} parent=1 // pred_check
      _
    $region19: #{tpu_custom_call.1} parent=1 // pred_check_branch
      %48 = sbr.rel (0) target = $region21
    $region20: #{tpu_custom_call.1} parent=1 // pred_region
      %s50 = ssub.s32 2048, 2048
      %51 = vsyncadd [#allocation6], %s50
      %s52 = sshll.u32 [#allocation7], 4
      %s53 = int_to_ptr.vmem [resolvable:$true] %s52
      %58 = dma.hbm_to_vmem [thread:$0]  %s4, 2048, %s53, [#allocation6], 128, 128, 8
    $region21: #{tpu_custom_call.1} parent=1 // pred_fallthru
      _
    // Predicated region
    $region22: #{tpu_custom_call.1} parent=1 // pred_check
      _
    $region23: #{tpu_custom_call.1} parent=1 // pred_check_branch
      %60 = sbr.rel (0) target = $region25
    $region24: #{tpu_custom_call.1} parent=1 // pred_region
      _
    $region25: #{tpu_custom_call.1} parent=1 // pred_fallthru
      _
    // Predicated region
    $region26: #{tpu_custom_call.1} parent=1 // pred_check
      _
    $region27: #{tpu_custom_call.1} parent=1 // pred_check_branch
      %62 = sbr.rel (0) target = $region29
    $region28: #{tpu_custom_call.1} parent=1 // pred_region
      %s64 = ssub.s32 2048, 2048
      %65 = vsyncadd [#allocation9], %s64
      %s66 = sshll.u32 [#allocation8], 4
      %s67 = int_to_ptr.vmem [resolvable:$true] %s66
      %72 = dma.hbm_to_vmem [thread:$0]  %s6, 2048, %s67, [#allocation9], 128, 128, 8
    $region29: #{tpu_custom_call.1} parent=1 // pred_fallthru
      _
    // Predicated region
    $region30: #{tpu_custom_call.1} parent=1 // pred_check
      _
    $region31: #{tpu_custom_call.1} parent=1 // pred_check_branch
      %74 = sbr.rel (0) target = $region33
    $region32: #{tpu_custom_call.1} parent=1 // pred_region
      _
    $region33: #{tpu_custom_call.1} parent=1 // pred_fallthru
      _
    // Predicated region
    $region34: #{tpu_custom_call.1} parent=1 // pred_check
      _
    $region35: #{tpu_custom_call.1} parent=1 // pred_check_branch
      %76 = sbr.rel (0) target = $region37
    $region36: #{tpu_custom_call.1} parent=1 // pred_region
      %s78 = ssub.s32 2048, 2048
      %79 = vsyncadd [#allocation9], %s78
      %s80 = sshll.u32 [#allocation10], 4
      %s81 = int_to_ptr.vmem [resolvable:$true] %s80
      %86 = dma.hbm_to_vmem [thread:$0]  %s8, 2048, %s81, [#allocation9], 128, 128, 8
    $region37: #{tpu_custom_call.1} parent=1 // pred_fallthru
      _
    // Predicated region
    $region38: #{tpu_custom_call.1} parent=1 // pred_check
      _
    $region39: #{tpu_custom_call.1} parent=1 // pred_check_branch
      %88 = sbr.rel (0) target = $region41
    $region40: #{tpu_custom_call.1} parent=1 // pred_region
      _
    $region41: #{tpu_custom_call.1} parent=1 // pred_fallthru
      _
    // Predicated region
    $region42: #{tpu_custom_call.1} parent=1 // pred_check
      _
    $region43: #{tpu_custom_call.1} parent=1 // pred_check_branch
      %90 = sbr.rel (0) target = $region45
    $region44: #{tpu_custom_call.1} parent=1 // pred_region
      %91 = dma.done [#allocation3], 256
    $region45: #{tpu_custom_call.1} parent=1 // pred_fallthru
      _
    // Predicated region
    $region46: #{tpu_custom_call.1} parent=1 // pred_check
      _
    $region47: #{tpu_custom_call.1} parent=1 // pred_check_branch
      %93 = sbr.rel (0) target = $region49
    $region48: #{tpu_custom_call.1} parent=1 // pred_region
      %94 = dma.done [#allocation6], 2048
    $region49: #{tpu_custom_call.1} parent=1 // pred_fallthru
      _
    // Predicated region
    $region50: #{tpu_custom_call.1} parent=1 // pred_check
      _
    $region51: #{tpu_custom_call.1} parent=1 // pred_check_branch
      %96 = sbr.rel (0) target = $region53
    $region52: #{tpu_custom_call.1} parent=1 // pred_region
      %97 = dma.done [#allocation6], 2048
    $region53: #{tpu_custom_call.1} parent=1 // pred_fallthru
      _
    // Predicated region
    $region54: #{tpu_custom_call.1} parent=1 // pred_check
      _
    $region55: #{tpu_custom_call.1} parent=1 // pred_check_branch
      %99 = sbr.rel (0) target = $region57
    $region56: #{tpu_custom_call.1} parent=1 // pred_region
      %100 = dma.done [#allocation9], 2048
    $region57: #{tpu_custom_call.1} parent=1 // pred_fallthru
      _
    // Predicated region
    $region58: #{tpu_custom_call.1} parent=1 // pred_check
      _
    $region59: #{tpu_custom_call.1} parent=1 // pred_check_branch
      %102 = sbr.rel (0) target = $region61
    $region60: #{tpu_custom_call.1} parent=1 // pred_region
      %103 = dma.done [#allocation9], 2048
    $region61: #{tpu_custom_call.1} parent=1 // pred_fallthru
      _
    %v104 = vld [vmem:[%s1] sm:$0xff]
    %v105 = vld [vmem:[%s1 + $0x8] sm:$0xff]
    %v106 = vld [vmem:[%s1 + $0x10] sm:$0xff]
    %v107 = vld [vmem:[%s1 + $0x18] sm:$0xff]
    %v108 = vld [vmem:[%s1 + $0x20] sm:$0xff]
    %v109 = vld [vmem:[%s1 + $0x28] sm:$0xff]
    %v110 = vld [vmem:[%s1 + $0x30] sm:$0xff]
    %v111 = vld [vmem:[%s1 + $0x38] sm:$0xff]
    %v112 = vld [vmem:[%s1 + $0x40] sm:$0xff]
    %v113 = vld [vmem:[%s1 + $0x48] sm:$0xff]
    %v114 = vld [vmem:[%s1 + $0x50] sm:$0xff]
    %v115 = vld [vmem:[%s1 + $0x58] sm:$0xff]
    %v116 = vld [vmem:[%s1 + $0x60] sm:$0xff]
    %v117 = vld [vmem:[%s1 + $0x68] sm:$0xff]
    %v118 = vld [vmem:[%s1 + $0x70] sm:$0xff]
    %v119 = vld [vmem:[%s1 + $0x78] sm:$0xff]
    %v120 = vld [vmem:[#allocation7] sm:$0xff]
    %v121 = vld [vmem:[#allocation7 + $0x8] sm:$0xff]
    %v122 = vld [vmem:[#allocation7 + $0x10] sm:$0xff]
    %v123 = vld [vmem:[#allocation7 + $0x18] sm:$0xff]
    %v124 = vld [vmem:[#allocation7 + $0x20] sm:$0xff]
    %v125 = vld [vmem:[#allocation7 + $0x28] sm:$0xff]
    %v126 = vld [vmem:[#allocation7 + $0x30] sm:$0xff]
    %v127 = vld [vmem:[#allocation7 + $0x38] sm:$0xff]
    %v128 = vld [vmem:[#allocation7 + $0x40] sm:$0xff]
    %v129 = vld [vmem:[#allocation7 + $0x48] sm:$0xff]
    %v130 = vld [vmem:[#allocation7 + $0x50] sm:$0xff]
    %v131 = vld [vmem:[#allocation7 + $0x58] sm:$0xff]
    %v132 = vld [vmem:[#allocation7 + $0x60] sm:$0xff]
    %v133 = vld [vmem:[#allocation7 + $0x68] sm:$0xff]
    %v134 = vld [vmem:[#allocation7 + $0x70] sm:$0xff]
    %v135 = vld [vmem:[#allocation7 + $0x78] sm:$0xff]
    %v136 = vld [vmem:[%s5] sm:$0x1]
    %v138 = vlaneseq
    %v139 = vshrl.u32 %v138, 7
    %v140 = vsub.s32 0, %v139
    %v141 = vrot.slane %v136, %v140
    %143 = vmatprep.subr.mxu0 0.0
    %144 = vmatpush1.msra.mxu0 %v120
    %145 = vmatprep.subr.mxu0 0.0
    %146 = vmatpush1.msra.mxu0 %v121
    %147 = vmatprep.subr.mxu0 0.0
    %148 = vmatpush1.msra.mxu0 %v122
    %149 = vmatprep.subr.mxu0 0.0
    %150 = vmatpush1.msra.mxu0 %v123
    %151 = vmatprep.subr.mxu0 0.0
    %152 = vmatpush1.msra.mxu0 %v124
    %153 = vmatprep.subr.mxu0 0.0
    %154 = vmatpush1.msra.mxu0 %v125
    %155 = vmatprep.subr.mxu0 0.0
    %156 = vmatpush1.msra.mxu0 %v126
    %157 = vmatprep.subr.mxu0 0.0
    %158 = vmatpush1.msra.mxu0 %v127
    %159 = vmatprep.subr.mxu0 0.0
    %160 = vmatpush1.msra.mxu0 %v128
    %161 = vmatprep.subr.mxu0 0.0
    %162 = vmatpush1.msra.mxu0 %v129
    %163 = vmatprep.subr.mxu0 0.0
    %164 = vmatpush1.msra.mxu0 %v130
    %165 = vmatprep.subr.mxu0 0.0
    %166 = vmatpush1.msra.mxu0 %v131
    %167 = vmatprep.subr.mxu0 0.0
    %168 = vmatpush1.msra.mxu0 %v132
    %169 = vmatprep.subr.mxu0 0.0
    %170 = vmatpush1.msra.mxu0 %v133
    %171 = vmatprep.subr.mxu0 0.0
    %172 = vmatpush1.msra.mxu0 %v134
    %173 = vmatprep.subr.mxu0 0.0
    %174 = vmatpush1.msra.mxu0 %v135
    %175 = vmatprep.subr.mxu0 0.0
    %176 = vmatpush1.msra.mxu0 0.0
    %177 = vmatprep.subr.mxu0 0.0
    %178 = vmatpush1.msra.mxu0 0.0
    %179 = vmatprep.subr.mxu0 0.0
    %180 = vmatpush1.msra.mxu0 0.0
    %181 = vmatprep.subr.mxu0 0.0
    %182 = vmatpush1.msra.mxu0 0.0
    %183 = vmatprep.subr.mxu0 0.0
    %184 = vmatpush1.msra.mxu0 0.0
    %185 = vmatprep.subr.mxu0 0.0
    %186 = vmatpush1.msra.mxu0 0.0
    %187 = vmatprep.subr.mxu0 0.0
    %188 = vmatpush1.msra.mxu0 0.0
    %189 = vmatprep.subr.mxu0 0.0
    %190 = vmatpush1.msra.mxu0 0.0
    %191 = vmatprep.subr.mxu0 0.0
    %192 = vmatpush1.msra.mxu0 0.0
    %193 = vmatprep.subr.mxu0 0.0
    %194 = vmatpush1.msra.mxu0 0.0
    %195 = vmatprep.subr.mxu0 0.0
    %196 = vmatpush1.msra.mxu0 0.0
    %197 = vmatprep.subr.mxu0 0.0
    %198 = vmatpush1.msra.mxu0 0.0
    %199 = vmatprep.subr.mxu0 0.0
    %200 = vmatpush1.msra.mxu0 0.0
    %201 = vmatprep.subr.mxu0 0.0
    %202 = vmatpush1.msra.mxu0 0.0
    %203 = vmatprep.subr.mxu0 0.0
    %204 = vmatpush1.msra.mxu0 0.0
    %205 = vmatprep.subr.mxu0 0.0
    %206 = vmatpush1.msra.mxu0 0.0
    %207 = vmatprep.mubr.f32.mxu0 0.0
    %208 = vmatmul.mubr.f32.gmra.mrb[0].mxu0 %v104
    %v209 = vpop.f32.mrb[0].mxu0
    %v210 = vadd.f32 %v141, %v209
    %v211 = vpop.f32.mrb[0].mxu0
    %212 = vmatprep.mubr.f32.mxu0 0.0
    %213 = vmatmul.mubr.f32.gmra.mrb[0].mxu0 %v105
    %v214 = vpop.f32.mrb[0].mxu0
    %v215 = vadd.f32 %v141, %v214
    %v216 = vpop.f32.mrb[0].mxu0
    %217 = vmatprep.mubr.f32.mxu0 0.0
    %218 = vmatmul.mubr.f32.gmra.mrb[0].mxu0 %v106
    %v219 = vpop.f32.mrb[0].mxu0
    %v220 = vadd.f32 %v141, %v219
    %v221 = vpop.f32.mrb[0].mxu0
    %222 = vmatprep.mubr.f32.mxu0 0.0
    %223 = vmatmul.mubr.f32.gmra.mrb[0].mxu0 %v107
    %v224 = vpop.f32.mrb[0].mxu0
    %v225 = vadd.f32 %v141, %v224
    %v226 = vpop.f32.mrb[0].mxu0
    %227 = vmatprep.mubr.f32.mxu0 0.0
    %228 = vmatmul.mubr.f32.gmra.mrb[0].mxu0 %v108
    %v229 = vpop.f32.mrb[0].mxu0
    %v230 = vadd.f32 %v141, %v229
    %v231 = vpop.f32.mrb[0].mxu0
    %232 = vmatprep.mubr.f32.mxu0 0.0
    %233 = vmatmul.mubr.f32.gmra.mrb[0].mxu0 %v109
    %v234 = vpop.f32.mrb[0].mxu0
    %v235 = vadd.f32 %v141, %v234
    %v236 = vpop.f32.mrb[0].mxu0
    %237 = vmatprep.mubr.f32.mxu0 0.0
    %238 = vmatmul.mubr.f32.gmra.mrb[0].mxu0 %v110
    %v239 = vpop.f32.mrb[0].mxu0
    %v240 = vadd.f32 %v141, %v239
    %v241 = vpop.f32.mrb[0].mxu0
    %242 = vmatprep.mubr.f32.mxu0 0.0
    %243 = vmatmul.mubr.f32.gmra.mrb[0].mxu0 %v111
    %v244 = vpop.f32.mrb[0].mxu0
    %v245 = vadd.f32 %v141, %v244
    %v246 = vpop.f32.mrb[0].mxu0
    %247 = vmatprep.mubr.f32.mxu0 0.0
    %248 = vmatmul.mubr.f32.gmra.mrb[0].mxu0 %v112
    %v249 = vpop.f32.mrb[0].mxu0
    %v250 = vadd.f32 %v141, %v249
    %v251 = vpop.f32.mrb[0].mxu0
    %252 = vmatprep.mubr.f32.mxu0 0.0
    %253 = vmatmul.mubr.f32.gmra.mrb[0].mxu0 %v113
    %v254 = vpop.f32.mrb[0].mxu0
    %v255 = vadd.f32 %v141, %v254
    %v256 = vpop.f32.mrb[0].mxu0
    %257 = vmatprep.mubr.f32.mxu0 0.0
    %258 = vmatmul.mubr.f32.gmra.mrb[0].mxu0 %v114
    %v259 = vpop.f32.mrb[0].mxu0
    %v260 = vadd.f32 %v141, %v259
    %v261 = vpop.f32.mrb[0].mxu0
    %262 = vmatprep.mubr.f32.mxu0 0.0
    %263 = vmatmul.mubr.f32.gmra.mrb[0].mxu0 %v115
    %v264 = vpop.f32.mrb[0].mxu0
    %v265 = vadd.f32 %v141, %v264
    %v266 = vpop.f32.mrb[0].mxu0
    %267 = vmatprep.mubr.f32.mxu0 0.0
    %268 = vmatmul.mubr.f32.gmra.mrb[0].mxu0 %v116
    %v269 = vpop.f32.mrb[0].mxu0
    %v270 = vadd.f32 %v141, %v269
    %v271 = vpop.f32.mrb[0].mxu0
    %272 = vmatprep.mubr.f32.mxu0 0.0
    %273 = vmatmul.mubr.f32.gmra.mrb[0].mxu0 %v117
    %v274 = vpop.f32.mrb[0].mxu0
    %v275 = vadd.f32 %v141, %v274
    %v276 = vpop.f32.mrb[0].mxu0
    %277 = vmatprep.mubr.f32.mxu0 0.0
    %278 = vmatmul.mubr.f32.gmra.mrb[0].mxu0 %v118
    %v279 = vpop.f32.mrb[0].mxu0
    %v280 = vadd.f32 %v141, %v279
    %v281 = vpop.f32.mrb[0].mxu0
    %282 = vmatprep.mubr.f32.mxu0 0.0
    %283 = vmatmul.mubr.f32.gmra.mrb[0].mxu0 %v119
    %v284 = vpop.f32.mrb[0].mxu0
    %v285 = vadd.f32 %v141, %v284
    %v286 = vpop.f32.mrb[0].mxu0
    %287 = vdwg.mxu0
    %v288 = vmax.f32 %v210, 0.0
    %v289 = vmax.f32 %v215, 0.0
    %v290 = vmax.f32 %v220, 0.0
    %v291 = vmax.f32 %v225, 0.0
    %v292 = vmax.f32 %v230, 0.0
    %v293 = vmax.f32 %v235, 0.0
    %v294 = vmax.f32 %v240, 0.0
    %v295 = vmax.f32 %v245, 0.0
    %v296 = vmax.f32 %v250, 0.0
    %v297 = vmax.f32 %v255, 0.0
    %v298 = vmax.f32 %v260, 0.0
    %v299 = vmax.f32 %v265, 0.0
    %v300 = vmax.f32 %v270, 0.0
    %v301 = vmax.f32 %v275, 0.0
    %v302 = vmax.f32 %v280, 0.0
    %v303 = vmax.f32 %v285, 0.0
    %vm304 = vcmp.ne.f32.partialorder %v210, %v210
    %vm305 = vcmp.ne.f32.partialorder %v215, %v215
    %vm306 = vcmp.ne.f32.partialorder %v220, %v220
    %vm307 = vcmp.ne.f32.partialorder %v225, %v225
    %vm308 = vcmp.ne.f32.partialorder %v230, %v230
    %vm309 = vcmp.ne.f32.partialorder %v235, %v235
    %vm310 = vcmp.ne.f32.partialorder %v240, %v240
    %vm311 = vcmp.ne.f32.partialorder %v245, %v245
    %vm312 = vcmp.ne.f32.partialorder %v250, %v250
    %vm313 = vcmp.ne.f32.partialorder %v255, %v255
    %vm314 = vcmp.ne.f32.partialorder %v260, %v260
    %vm315 = vcmp.ne.f32.partialorder %v265, %v265
    %vm316 = vcmp.ne.f32.partialorder %v270, %v270
    %vm317 = vcmp.ne.f32.partialorder %v275, %v275
    %vm318 = vcmp.ne.f32.partialorder %v280, %v280
    %vm319 = vcmp.ne.f32.partialorder %v285, %v285
    %v320 = vadd.f32 %v210, 0.0
    %v321 = vadd.f32 %v215, 0.0
    %v322 = vadd.f32 %v220, 0.0
    %v323 = vadd.f32 %v225, 0.0
    %v324 = vadd.f32 %v230, 0.0
    %v325 = vadd.f32 %v235, 0.0
    %v326 = vadd.f32 %v240, 0.0
    %v327 = vadd.f32 %v245, 0.0
    %v328 = vadd.f32 %v250, 0.0
    %v329 = vadd.f32 %v255, 0.0
    %v330 = vadd.f32 %v260, 0.0
    %v331 = vadd.f32 %v265, 0.0
    %v332 = vadd.f32 %v270, 0.0
    %v333 = vadd.f32 %v275, 0.0
    %v334 = vadd.f32 %v280, 0.0
    %v335 = vadd.f32 %v285, 0.0
    %v336 = vand.u32 2147483647, %v210
    %v337 = vand.u32 2147483647, %v215
    %v338 = vand.u32 2147483647, %v220
    %v339 = vand.u32 2147483647, %v225
    %v340 = vand.u32 2147483647, %v230
    %v341 = vand.u32 2147483647, %v235
    %v342 = vand.u32 2147483647, %v240
    %v343 = vand.u32 2147483647, %v245
    %v344 = vand.u32 2147483647, %v250
    %v345 = vand.u32 2147483647, %v255
    %v346 = vand.u32 2147483647, %v260
    %v347 = vand.u32 2147483647, %v265
    %v348 = vand.u32 2147483647, %v270
    %v349 = vand.u32 2147483647, %v275
    %v350 = vand.u32 2147483647, %v280
    %v351 = vand.u32 2147483647, %v285
    %v352 = vsub.f32 0.0, %v336
    %v353 = vsub.f32 0.0, %v337
    %v354 = vsub.f32 0.0, %v338
    %v355 = vsub.f32 0.0, %v339
    %v356 = vsub.f32 0.0, %v340
    %v357 = vsub.f32 0.0, %v341
    %v358 = vsub.f32 0.0, %v342
    %v359 = vsub.f32 0.0, %v343
    %v360 = vsub.f32 0.0, %v344
    %v361 = vsub.f32 0.0, %v345
    %v362 = vsub.f32 0.0, %v346
    %v363 = vsub.f32 0.0, %v347
    %v364 = vsub.f32 0.0, %v348
    %v365 = vsub.f32 0.0, %v349
    %v366 = vsub.f32 0.0, %v350
    %v367 = vsub.f32 0.0, %v351
    %v368 = vmul.f32 %v352, 1.442695
    %v369 = vpow.pop %v368
    %v370 = vmul.f32 %v353, 1.442695
    %v371 = vpow.pop %v370
    %v372 = vmul.f32 %v354, 1.442695
    %v373 = vpow.pop %v372
    %v374 = vmul.f32 %v355, 1.442695
    %v375 = vpow.pop %v374
    %v376 = vmul.f32 %v356, 1.442695
    %v377 = vpow.pop %v376
    %v378 = vmul.f32 %v357, 1.442695
    %v379 = vpow.pop %v378
    %v380 = vmul.f32 %v358, 1.442695
    %v381 = vpow.pop %v380
    %v382 = vmul.f32 %v359, 1.442695
    %v383 = vpow.pop %v382
    %v384 = vmul.f32 %v360, 1.442695
    %v385 = vpow.pop %v384
    %v386 = vmul.f32 %v361, 1.442695
    %v387 = vpow.pop %v386
    %v388 = vmul.f32 %v362, 1.442695
    %v389 = vpow.pop %v388
    %v390 = vmul.f32 %v363, 1.442695
    %v391 = vpow.pop %v390
    %v392 = vmul.f32 %v364, 1.442695
    %v393 = vpow.pop %v392
    %v394 = vmul.f32 %v365, 1.442695
    %v395 = vpow.pop %v394
    %v396 = vmul.f32 %v366, 1.442695
    %v397 = vpow.pop %v396
    %v398 = vmul.f32 %v367, 1.442695
    %v399 = vpow.pop %v398
    %v400 = vadd.f32 %v369, 1.0
    %v401 = vlog2.pop %v400
    %v402 = vmul.f32 %v401, 0.6931472
    %v403 = vmul.f32 -0.5, %v369
    %v404 = vadd.f32 %v403, 1.0
    %v405 = vmul.f32 %v404, %v369
    %v406 = vand.u32 2147483647, %v369
    %vm407 = vcmp.lt.f32.partialorder %v406, 0.0004427343
    %v408 = vsel %vm407, %v405, %v402
    %v409 = vadd.f32 %v371, 1.0
    %v410 = vlog2.pop %v409
    %v411 = vmul.f32 %v410, 0.6931472
    %v412 = vmul.f32 -0.5, %v371
    %v413 = vadd.f32 %v412, 1.0
    %v414 = vmul.f32 %v413, %v371
    %v415 = vand.u32 2147483647, %v371
    %vm416 = vcmp.lt.f32.partialorder %v415, 0.0004427343
    %v417 = vsel %vm416, %v414, %v411
    %v418 = vadd.f32 %v373, 1.0
    %v419 = vlog2.pop %v418
    %v420 = vmul.f32 %v419, 0.6931472
    %v421 = vmul.f32 -0.5, %v373
    %v422 = vadd.f32 %v421, 1.0
    %v423 = vmul.f32 %v422, %v373
    %v424 = vand.u32 2147483647, %v373
    %vm425 = vcmp.lt.f32.partialorder %v424, 0.0004427343
    %v426 = vsel %vm425, %v423, %v420
    %v427 = vadd.f32 %v375, 1.0
    %v428 = vlog2.pop %v427
    %v429 = vmul.f32 %v428, 0.6931472
    %v430 = vmul.f32 -0.5, %v375
    %v431 = vadd.f32 %v430, 1.0
    %v432 = vmul.f32 %v431, %v375
    %v433 = vand.u32 2147483647, %v375
    %vm434 = vcmp.lt.f32.partialorder %v433, 0.0004427343
    %v435 = vsel %vm434, %v432, %v429
    %v436 = vadd.f32 %v377, 1.0
    %v437 = vlog2.pop %v436
    %v438 = vmul.f32 %v437, 0.6931472
    %v439 = vmul.f32 -0.5, %v377
    %v440 = vadd.f32 %v439, 1.0
    %v441 = vmul.f32 %v440, %v377
    %v442 = vand.u32 2147483647, %v377
    %vm443 = vcmp.lt.f32.partialorder %v442, 0.0004427343
    %v444 = vsel %vm443, %v441, %v438
    %v445 = vadd.f32 %v379, 1.0
    %v446 = vlog2.pop %v445
    %v447 = vmul.f32 %v446, 0.6931472
    %v448 = vmul.f32 -0.5, %v379
    %v449 = vadd.f32 %v448, 1.0
    %v450 = vmul.f32 %v449, %v379
    %v451 = vand.u32 2147483647, %v379
    %vm452 = vcmp.lt.f32.partialorder %v451, 0.0004427343
    %v453 = vsel %vm452, %v450, %v447
    %v454 = vadd.f32 %v381, 1.0
    %v455 = vlog2.pop %v454
    %v456 = vmul.f32 %v455, 0.6931472
    %v457 = vmul.f32 -0.5, %v381
    %v458 = vadd.f32 %v457, 1.0
    %v459 = vmul.f32 %v458, %v381
    %v460 = vand.u32 2147483647, %v381
    %vm461 = vcmp.lt.f32.partialorder %v460, 0.0004427343
    %v462 = vsel %vm461, %v459, %v456
    %v463 = vadd.f32 %v383, 1.0
    %v464 = vlog2.pop %v463
    %v465 = vmul.f32 %v464, 0.6931472
    %v466 = vmul.f32 -0.5, %v383
    %v467 = vadd.f32 %v466, 1.0
    %v468 = vmul.f32 %v467, %v383
    %v469 = vand.u32 2147483647, %v383
    %vm470 = vcmp.lt.f32.partialorder %v469, 0.0004427343
    %v471 = vsel %vm470, %v468, %v465
    %v472 = vadd.f32 %v385, 1.0
    %v473 = vlog2.pop %v472
    %v474 = vmul.f32 %v473, 0.6931472
    %v475 = vmul.f32 -0.5, %v385
    %v476 = vadd.f32 %v475, 1.0
    %v477 = vmul.f32 %v476, %v385
    %v478 = vand.u32 2147483647, %v385
    %vm479 = vcmp.lt.f32.partialorder %v478, 0.0004427343
    %v480 = vsel %vm479, %v477, %v474
    %v481 = vadd.f32 %v387, 1.0
    %v482 = vlog2.pop %v481
    %v483 = vmul.f32 %v482, 0.6931472
    %v484 = vmul.f32 -0.5, %v387
    %v485 = vadd.f32 %v484, 1.0
    %v486 = vmul.f32 %v485, %v387
    %v487 = vand.u32 2147483647, %v387
    %vm488 = vcmp.lt.f32.partialorder %v487, 0.0004427343
    %v489 = vsel %vm488, %v486, %v483
    %v490 = vadd.f32 %v389, 1.0
    %v491 = vlog2.pop %v490
    %v492 = vmul.f32 %v491, 0.6931472
    %v493 = vmul.f32 -0.5, %v389
    %v494 = vadd.f32 %v493, 1.0
    %v495 = vmul.f32 %v494, %v389
    %v496 = vand.u32 2147483647, %v389
    %vm497 = vcmp.lt.f32.partialorder %v496, 0.0004427343
    %v498 = vsel %vm497, %v495, %v492
    %v499 = vadd.f32 %v391, 1.0
    %v500 = vlog2.pop %v499
    %v501 = vmul.f32 %v500, 0.6931472
    %v502 = vmul.f32 -0.5, %v391
    %v503 = vadd.f32 %v502, 1.0
    %v504 = vmul.f32 %v503, %v391
    %v505 = vand.u32 2147483647, %v391
    %vm506 = vcmp.lt.f32.partialorder %v505, 0.0004427343
    %v507 = vsel %vm506, %v504, %v501
    %v508 = vadd.f32 %v393, 1.0
    %v509 = vlog2.pop %v508
    %v510 = vmul.f32 %v509, 0.6931472
    %v511 = vmul.f32 -0.5, %v393
    %v512 = vadd.f32 %v511, 1.0
    %v513 = vmul.f32 %v512, %v393
    %v514 = vand.u32 2147483647, %v393
    %vm515 = vcmp.lt.f32.partialorder %v514, 0.0004427343
    %v516 = vsel %vm515, %v513, %v510
    %v517 = vadd.f32 %v395, 1.0
    %v518 = vlog2.pop %v517
    %v519 = vmul.f32 %v518, 0.6931472
    %v520 = vmul.f32 -0.5, %v395
    %v521 = vadd.f32 %v520, 1.0
    %v522 = vmul.f32 %v521, %v395
    %v523 = vand.u32 2147483647, %v395
    %vm524 = vcmp.lt.f32.partialorder %v523, 0.0004427343
    %v525 = vsel %vm524, %v522, %v519
    %v526 = vadd.f32 %v397, 1.0
    %v527 = vlog2.pop %v526
    %v528 = vmul.f32 %v527, 0.6931472
    %v529 = vmul.f32 -0.5, %v397
    %v530 = vadd.f32 %v529, 1.0
    %v531 = vmul.f32 %v530, %v397
    %v532 = vand.u32 2147483647, %v397
    %vm533 = vcmp.lt.f32.partialorder %v532, 0.0004427343
    %v534 = vsel %vm533, %v531, %v528
    %v535 = vadd.f32 %v399, 1.0
    %v536 = vlog2.pop %v535
    %v537 = vmul.f32 %v536, 0.6931472
    %v538 = vmul.f32 -0.5, %v399
    %v539 = vadd.f32 %v538, 1.0
    %v540 = vmul.f32 %v539, %v399
    %v541 = vand.u32 2147483647, %v399
    %vm542 = vcmp.lt.f32.partialorder %v541, 0.0004427343
    %v543 = vsel %vm542, %v540, %v537
    %v544 = vadd.f32 %v288, %v408
    %v545 = vadd.f32 %v289, %v417
    %v546 = vadd.f32 %v290, %v426
    %v547 = vadd.f32 %v291, %v435
    %v548 = vadd.f32 %v292, %v444
    %v549 = vadd.f32 %v293, %v453
    %v550 = vadd.f32 %v294, %v462
    %v551 = vadd.f32 %v295, %v471
    %v552 = vadd.f32 %v296, %v480
    %v553 = vadd.f32 %v297, %v489
    %v554 = vadd.f32 %v298, %v498
    %v555 = vadd.f32 %v299, %v507
    %v556 = vadd.f32 %v300, %v516
    %v557 = vadd.f32 %v301, %v525
    %v558 = vadd.f32 %v302, %v534
    %v559 = vadd.f32 %v303, %v543
    %v560 = vsel %vm304, %v320, %v544
    %v561 = vsel %vm305, %v321, %v545
    %v562 = vsel %vm306, %v322, %v546
    %v563 = vsel %vm307, %v323, %v547
    %v564 = vsel %vm308, %v324, %v548
    %v565 = vsel %vm309, %v325, %v549
    %v566 = vsel %vm310, %v326, %v550
    %v567 = vsel %vm311, %v327, %v551
    %v568 = vsel %vm312, %v328, %v552
    %v569 = vsel %vm313, %v329, %v553
    %v570 = vsel %vm314, %v330, %v554
    %v571 = vsel %vm315, %v331, %v555
    %v572 = vsel %vm316, %v332, %v556
    %v573 = vsel %vm317, %v333, %v557
    %v574 = vsel %vm318, %v334, %v558
    %v575 = vsel %vm319, %v335, %v559
    %v576 = vsub.f32 %v560, 0.6931472
    %v577 = vsub.f32 %v561, 0.6931472
    %v578 = vsub.f32 %v562, 0.6931472
    %v579 = vsub.f32 %v563, 0.6931472
    %v580 = vsub.f32 %v564, 0.6931472
    %v581 = vsub.f32 %v565, 0.6931472
    %v582 = vsub.f32 %v566, 0.6931472
    %v583 = vsub.f32 %v567, 0.6931472
    %v584 = vsub.f32 %v568, 0.6931472
    %v585 = vsub.f32 %v569, 0.6931472
    %v586 = vsub.f32 %v570, 0.6931472
    %v587 = vsub.f32 %v571, 0.6931472
    %v588 = vsub.f32 %v572, 0.6931472
    %v589 = vsub.f32 %v573, 0.6931472
    %v590 = vsub.f32 %v574, 0.6931472
    %v591 = vsub.f32 %v575, 0.6931472
    %v592 = vld [vmem:[#allocation8] sm:$0xff]
    %v593 = vld [vmem:[#allocation8 + $0x8] sm:$0xff]
    %v594 = vld [vmem:[#allocation8 + $0x10] sm:$0xff]
    %v595 = vld [vmem:[#allocation8 + $0x18] sm:$0xff]
    %v596 = vld [vmem:[#allocation8 + $0x20] sm:$0xff]
    %v597 = vld [vmem:[#allocation8 + $0x28] sm:$0xff]
    %v598 = vld [vmem:[#allocation8 + $0x30] sm:$0xff]
    %v599 = vld [vmem:[#allocation8 + $0x38] sm:$0xff]
    %v600 = vld [vmem:[#allocation8 + $0x40] sm:$0xff]
    %v601 = vld [vmem:[#allocation8 + $0x48] sm:$0xff]
    %v602 = vld [vmem:[#allocation8 + $0x50] sm:$0xff]
    %v603 = vld [vmem:[#allocation8 + $0x58] sm:$0xff]
    %v604 = vld [vmem:[#allocation8 + $0x60] sm:$0xff]
    %v605 = vld [vmem:[#allocation8 + $0x68] sm:$0xff]
    %v606 = vld [vmem:[#allocation8 + $0x70] sm:$0xff]
    %v607 = vld [vmem:[#allocation8 + $0x78] sm:$0xff]
    %v608 = vld [vmem:[%s7] sm:$0x1]
    %v610 = vlaneseq
    %v611 = vshrl.u32 %v610, 7
    %v612 = vsub.s32 0, %v611
    %v613 = vrot.slane %v608, %v612
    %615 = vmatprep.subr.mxu0 0.0
    %616 = vmatpush1.msra.mxu0 %v592
    %617 = vmatprep.subr.mxu0 0.0
    %618 = vmatpush1.msra.mxu0 %v593
    %619 = vmatprep.subr.mxu0 0.0
    %620 = vmatpush1.msra.mxu0 %v594
    %621 = vmatprep.subr.mxu0 0.0
    %622 = vmatpush1.msra.mxu0 %v595
    %623 = vmatprep.subr.mxu0 0.0
    %624 = vmatpush1.msra.mxu0 %v596
    %625 = vmatprep.subr.mxu0 0.0
    %626 = vmatpush1.msra.mxu0 %v597
    %627 = vmatprep.subr.mxu0 0.0
    %628 = vmatpush1.msra.mxu0 %v598
    %629 = vmatprep.subr.mxu0 0.0
    %630 = vmatpush1.msra.mxu0 %v599
    %631 = vmatprep.subr.mxu0 0.0
    %632 = vmatpush1.msra.mxu0 %v600
    %633 = vmatprep.subr.mxu0 0.0
    %634 = vmatpush1.msra.mxu0 %v601
    %635 = vmatprep.subr.mxu0 0.0
    %636 = vmatpush1.msra.mxu0 %v602
    %637 = vmatprep.subr.mxu0 0.0
    %638 = vmatpush1.msra.mxu0 %v603
    %639 = vmatprep.subr.mxu0 0.0
    %640 = vmatpush1.msra.mxu0 %v604
    %641 = vmatprep.subr.mxu0 0.0
    %642 = vmatpush1.msra.mxu0 %v605
    %643 = vmatprep.subr.mxu0 0.0
    %644 = vmatpush1.msra.mxu0 %v606
    %645 = vmatprep.subr.mxu0 0.0
    %646 = vmatpush1.msra.mxu0 %v607
    %647 = vmatprep.subr.mxu0 0.0
    %648 = vmatpush1.msra.mxu0 0.0
    %649 = vmatprep.subr.mxu0 0.0
    %650 = vmatpush1.msra.mxu0 0.0
    %651 = vmatprep.subr.mxu0 0.0
    %652 = vmatpush1.msra.mxu0 0.0
    %653 = vmatprep.subr.mxu0 0.0
    %654 = vmatpush1.msra.mxu0 0.0
    %655 = vmatprep.subr.mxu0 0.0
    %656 = vmatpush1.msra.mxu0 0.0
    %657 = vmatprep.subr.mxu0 0.0
    %658 = vmatpush1.msra.mxu0 0.0
    %659 = vmatprep.subr.mxu0 0.0
    %660 = vmatpush1.msra.mxu0 0.0
    %661 = vmatprep.subr.mxu0 0.0
    %662 = vmatpush1.msra.mxu0 0.0
    %663 = vmatprep.subr.mxu0 0.0
    %664 = vmatpush1.msra.mxu0 0.0
    %665 = vmatprep.subr.mxu0 0.0
    %666 = vmatpush1.msra.mxu0 0.0
    %667 = vmatprep.subr.mxu0 0.0
    %668 = vmatpush1.msra.mxu0 0.0
    %669 = vmatprep.subr.mxu0 0.0
    %670 = vmatpush1.msra.mxu0 0.0
    %671 = vmatprep.subr.mxu0 0.0
    %672 = vmatpush1.msra.mxu0 0.0
    %673 = vmatprep.subr.mxu0 0.0
    %674 = vmatpush1.msra.mxu0 0.0
    %675 = vmatprep.subr.mxu0 0.0
    %676 = vmatpush1.msra.mxu0 0.0
    %677 = vmatprep.subr.mxu0 0.0
    %678 = vmatpush1.msra.mxu0 0.0
    %679 = vmatprep.mubr.f32.mxu0 0.0
    %680 = vmatmul.mubr.f32.gmra.mrb[0].mxu0 %v576
    %v681 = vpop.f32.mrb[0].mxu0
    %v682 = vadd.f32 %v613, %v681
    %v683 = vpop.f32.mrb[0].mxu0
    %684 = vmatprep.mubr.f32.mxu0 0.0
    %685 = vmatmul.mubr.f32.gmra.mrb[0].mxu0 %v577
    %v686 = vpop.f32.mrb[0].mxu0
    %v687 = vadd.f32 %v613, %v686
    %v688 = vpop.f32.mrb[0].mxu0
    %689 = vmatprep.mubr.f32.mxu0 0.0
    %690 = vmatmul.mubr.f32.gmra.mrb[0].mxu0 %v578
    %v691 = vpop.f32.mrb[0].mxu0
    %v692 = vadd.f32 %v613, %v691
    %v693 = vpop.f32.mrb[0].mxu0
    %694 = vmatprep.mubr.f32.mxu0 0.0
    %695 = vmatmul.mubr.f32.gmra.mrb[0].mxu0 %v579
    %v696 = vpop.f32.mrb[0].mxu0
    %v697 = vadd.f32 %v613, %v696
    %v698 = vpop.f32.mrb[0].mxu0
    %699 = vmatprep.mubr.f32.mxu0 0.0
    %700 = vmatmul.mubr.f32.gmra.mrb[0].mxu0 %v580
    %v701 = vpop.f32.mrb[0].mxu0
    %v702 = vadd.f32 %v613, %v701
    %v703 = vpop.f32.mrb[0].mxu0
    %704 = vmatprep.mubr.f32.mxu0 0.0
    %705 = vmatmul.mubr.f32.gmra.mrb[0].mxu0 %v581
    %v706 = vpop.f32.mrb[0].mxu0
    %v707 = vadd.f32 %v613, %v706
    %v708 = vpop.f32.mrb[0].mxu0
    %709 = vmatprep.mubr.f32.mxu0 0.0
    %710 = vmatmul.mubr.f32.gmra.mrb[0].mxu0 %v582
    %v711 = vpop.f32.mrb[0].mxu0
    %v712 = vadd.f32 %v613, %v711
    %v713 = vpop.f32.mrb[0].mxu0
    %714 = vmatprep.mubr.f32.mxu0 0.0
    %715 = vmatmul.mubr.f32.gmra.mrb[0].mxu0 %v583
    %v716 = vpop.f32.mrb[0].mxu0
    %v717 = vadd.f32 %v613, %v716
    %v718 = vpop.f32.mrb[0].mxu0
    %719 = vmatprep.mubr.f32.mxu0 0.0
    %720 = vmatmul.mubr.f32.gmra.mrb[0].mxu0 %v584
    %v721 = vpop.f32.mrb[0].mxu0
    %v722 = vadd.f32 %v613, %v721
    %v723 = vpop.f32.mrb[0].mxu0
    %724 = vmatprep.mubr.f32.mxu0 0.0
    %725 = vmatmul.mubr.f32.gmra.mrb[0].mxu0 %v585
    %v726 = vpop.f32.mrb[0].mxu0
    %v727 = vadd.f32 %v613, %v726
    %v728 = vpop.f32.mrb[0].mxu0
    %729 = vmatprep.mubr.f32.mxu0 0.0
    %730 = vmatmul.mubr.f32.gmra.mrb[0].mxu0 %v586
    %v731 = vpop.f32.mrb[0].mxu0
    %v732 = vadd.f32 %v613, %v731
    %v733 = vpop.f32.mrb[0].mxu0
    %734 = vmatprep.mubr.f32.mxu0 0.0
    %735 = vmatmul.mubr.f32.gmra.mrb[0].mxu0 %v587
    %v736 = vpop.f32.mrb[0].mxu0
    %v737 = vadd.f32 %v613, %v736
    %v738 = vpop.f32.mrb[0].mxu0
    %739 = vmatprep.mubr.f32.mxu0 0.0
    %740 = vmatmul.mubr.f32.gmra.mrb[0].mxu0 %v588
    %v741 = vpop.f32.mrb[0].mxu0
    %v742 = vadd.f32 %v613, %v741
    %v743 = vpop.f32.mrb[0].mxu0
    %744 = vmatprep.mubr.f32.mxu0 0.0
    %745 = vmatmul.mubr.f32.gmra.mrb[0].mxu0 %v589
    %v746 = vpop.f32.mrb[0].mxu0
    %v747 = vadd.f32 %v613, %v746
    %v748 = vpop.f32.mrb[0].mxu0
    %749 = vmatprep.mubr.f32.mxu0 0.0
    %750 = vmatmul.mubr.f32.gmra.mrb[0].mxu0 %v590
    %v751 = vpop.f32.mrb[0].mxu0
    %v752 = vadd.f32 %v613, %v751
    %v753 = vpop.f32.mrb[0].mxu0
    %754 = vmatprep.mubr.f32.mxu0 0.0
    %755 = vmatmul.mubr.f32.gmra.mrb[0].mxu0 %v591
    %v756 = vpop.f32.mrb[0].mxu0
    %v757 = vadd.f32 %v613, %v756
    %v758 = vpop.f32.mrb[0].mxu0
    %759 = vdwg.mxu0
    %v760 = vld [vmem:[#allocation2] sm:$0xff]
    %v761 = vld [vmem:[#allocation2 + $0x8] sm:$0xff]
    %v762 = vld [vmem:[#allocation5] sm:$0xff]
    %v763 = vld [vmem:[#allocation5 + $0x8] sm:$0xff]
    %v764 = vld [vmem:[#allocation5 + $0x10] sm:$0xff]
    %v765 = vld [vmem:[#allocation5 + $0x18] sm:$0xff]
    %v766 = vld [vmem:[#allocation5 + $0x20] sm:$0xff]
    %v767 = vld [vmem:[#allocation5 + $0x28] sm:$0xff]
    %v768 = vld [vmem:[#allocation5 + $0x30] sm:$0xff]
    %v769 = vld [vmem:[#allocation5 + $0x38] sm:$0xff]
    %v770 = vld [vmem:[#allocation5 + $0x40] sm:$0xff]
    %v771 = vld [vmem:[#allocation5 + $0x48] sm:$0xff]
    %v772 = vld [vmem:[#allocation5 + $0x50] sm:$0xff]
    %v773 = vld [vmem:[#allocation5 + $0x58] sm:$0xff]
    %v774 = vld [vmem:[#allocation5 + $0x60] sm:$0xff]
    %v775 = vld [vmem:[#allocation5 + $0x68] sm:$0xff]
    %v776 = vld [vmem:[#allocation5 + $0x70] sm:$0xff]
    %v777 = vld [vmem:[#allocation5 + $0x78] sm:$0xff]
    %778 = vmatprep.subr.mxu0 0.0
    %779 = vmatpush1.msra.mxu0 %v762
    %780 = vmatprep.subr.mxu0 0.0
    %781 = vmatpush1.msra.mxu0 %v763
    %782 = vmatprep.subr.mxu0 0.0
    %783 = vmatpush1.msra.mxu0 %v764
    %784 = vmatprep.subr.mxu0 0.0
    %785 = vmatpush1.msra.mxu0 %v765
    %786 = vmatprep.subr.mxu0 0.0
    %787 = vmatpush1.msra.mxu0 %v766
    %788 = vmatprep.subr.mxu0 0.0
    %789 = vmatpush1.msra.mxu0 %v767
    %790 = vmatprep.subr.mxu0 0.0
    %791 = vmatpush1.msra.mxu0 %v768
    %792 = vmatprep.subr.mxu0 0.0
    %793 = vmatpush1.msra.mxu0 %v769
    %794 = vmatprep.subr.mxu0 0.0
    %795 = vmatpush1.msra.mxu0 %v770
    %796 = vmatprep.subr.mxu0 0.0
    %797 = vmatpush1.msra.mxu0 %v771
    %798 = vmatprep.subr.mxu0 0.0
    %799 = vmatpush1.msra.mxu0 %v772
    %800 = vmatprep.subr.mxu0 0.0
    %801 = vmatpush1.msra.mxu0 %v773
    %802 = vmatprep.subr.mxu0 0.0
    %803 = vmatpush1.msra.mxu0 %v774
    %804 = vmatprep.subr.mxu0 0.0
    %805 = vmatpush1.msra.mxu0 %v775
    %806 = vmatprep.subr.mxu0 0.0
    %807 = vmatpush1.msra.mxu0 %v776
    %808 = vmatprep.subr.mxu0 0.0
    %809 = vmatpush1.msra.mxu0 %v777
    %810 = vmatprep.subr.mxu0 0.0
    %811 = vmatpush1.msra.mxu0 0.0
    %812 = vmatprep.subr.mxu0 0.0
    %813 = vmatpush1.msra.mxu0 0.0
    %814 = vmatprep.subr.mxu0 0.0
    %815 = vmatpush1.msra.mxu0 0.0
    %816 = vmatprep.subr.mxu0 0.0
    %817 = vmatpush1.msra.mxu0 0.0
    %818 = vmatprep.subr.mxu0 0.0
    %819 = vmatpush1.msra.mxu0 0.0
    %820 = vmatprep.subr.mxu0 0.0
    %821 = vmatpush1.msra.mxu0 0.0
    %822 = vmatprep.subr.mxu0 0.0
    %823 = vmatpush1.msra.mxu0 0.0
    %824 = vmatprep.subr.mxu0 0.0
    %825 = vmatpush1.msra.mxu0 0.0
    %826 = vmatprep.subr.mxu0 0.0
    %827 = vmatpush1.msra.mxu0 0.0
    %828 = vmatprep.subr.mxu0 0.0
    %829 = vmatpush1.msra.mxu0 0.0
    %830 = vmatprep.subr.mxu0 0.0
    %831 = vmatpush1.msra.mxu0 0.0
    %832 = vmatprep.subr.mxu0 0.0
    %833 = vmatpush1.msra.mxu0 0.0
    %834 = vmatprep.subr.mxu0 0.0
    %835 = vmatpush1.msra.mxu0 0.0
    %836 = vmatprep.subr.mxu0 0.0
    %837 = vmatpush1.msra.mxu0 0.0
    %838 = vmatprep.subr.mxu0 0.0
    %839 = vmatpush1.msra.mxu0 0.0
    %840 = vmatprep.subr.mxu0 0.0
    %841 = vmatpush1.msra.mxu0 0.0
    %842 = vmatprep.mubr.f32.mxu0 0.0
    %843 = vmatmul.mubr.f32.gmra.mrb[0].mxu0 %v760
    %v844 = vpop.f32.mrb[0].mxu0
    %v845 = vadd.f32 0.0, %v844
    %v846 = vpop.f32.mrb[0].mxu0
    %847 = vmatprep.mubr.f32.mxu0 0.0
    %848 = vmatmul.mubr.f32.gmra.mrb[0].mxu0 %v761
    %v849 = vpop.f32.mrb[0].mxu0
    %v850 = vadd.f32 0.0, %v849
    %v851 = vpop.f32.mrb[0].mxu0
    %852 = vdwg.mxu0
    %v853 = vld [vmem:[%s2] sm:$0xff]
    %v854 = vld [vmem:[%s2 + $0x8] sm:$0xff]
    %v855 = vld [vmem:[%s2 + $0x10] sm:$0xff]
    %v856 = vld [vmem:[%s2 + $0x18] sm:$0xff]
    %v857 = vld [vmem:[%s2 + $0x20] sm:$0xff]
    %v858 = vld [vmem:[%s2 + $0x28] sm:$0xff]
    %v859 = vld [vmem:[%s2 + $0x30] sm:$0xff]
    %v860 = vld [vmem:[%s2 + $0x38] sm:$0xff]
    %v861 = vld [vmem:[%s2 + $0x40] sm:$0xff]
    %v862 = vld [vmem:[%s2 + $0x48] sm:$0xff]
    %v863 = vld [vmem:[%s2 + $0x50] sm:$0xff]
    %v864 = vld [vmem:[%s2 + $0x58] sm:$0xff]
    %v865 = vld [vmem:[%s2 + $0x60] sm:$0xff]
    %v866 = vld [vmem:[%s2 + $0x68] sm:$0xff]
    %v867 = vld [vmem:[%s2 + $0x70] sm:$0xff]
    %v868 = vld [vmem:[%s2 + $0x78] sm:$0xff]
    %v869 = vshrl.u32 %v853, 16
    %v870 = vshrl.u32 %v854, 16
    %v871 = vshrl.u32 %v855, 16
    %v872 = vshrl.u32 %v856, 16
    %v873 = vshrl.u32 %v857, 16
    %v874 = vshrl.u32 %v858, 16
    %v875 = vshrl.u32 %v859, 16
    %v876 = vshrl.u32 %v860, 16
    %v877 = vshrl.u32 %v861, 16
    %v878 = vshrl.u32 %v862, 16
    %v879 = vshrl.u32 %v863, 16
    %v880 = vshrl.u32 %v864, 16
    %v881 = vshrl.u32 %v865, 16
    %v882 = vshrl.u32 %v866, 16
    %v883 = vshrl.u32 %v867, 16
    %v884 = vshrl.u32 %v868, 16
    %v885 = vshll.u32 %v853, 16
    %v886 = vshll.u32 %v854, 16
    %v887 = vshll.u32 %v855, 16
    %v888 = vshll.u32 %v856, 16
    %v889 = vshll.u32 %v857, 16
    %v890 = vshll.u32 %v858, 16
    %v891 = vshll.u32 %v859, 16
    %v892 = vshll.u32 %v860, 16
    %v893 = vshll.u32 %v861, 16
    %v894 = vshll.u32 %v862, 16
    %v895 = vshll.u32 %v863, 16
    %v896 = vshll.u32 %v864, 16
    %v897 = vshll.u32 %v865, 16
    %v898 = vshll.u32 %v866, 16
    %v899 = vshll.u32 %v867, 16
    %v900 = vshll.u32 %v868, 16
    %v901 = vlaneseq
    %v902 = vand.u32 %v901, 127
    %903 = vset.pattern.permute.xlu0 0
    %904 = vperm.xlu0 %903, %v869
    %v905 = vpop.permute.xlu0 %904
    %906 = vset.pattern.permute.xlu0 0
    %907 = vperm.xlu0 %906, %v870
    %v908 = vpop.permute.xlu0 %907
    %909 = vset.pattern.permute.xlu0 0
    %910 = vperm.xlu0 %909, %v871
    %v911 = vpop.permute.xlu0 %910
    %912 = vset.pattern.permute.xlu0 0
    %913 = vperm.xlu0 %912, %v872
    %v914 = vpop.permute.xlu0 %913
    %915 = vset.pattern.permute.xlu0 0
    %916 = vperm.xlu0 %915, %v873
    %v917 = vpop.permute.xlu0 %916
    %918 = vset.pattern.permute.xlu0 0
    %919 = vperm.xlu0 %918, %v874
    %v920 = vpop.permute.xlu0 %919
    %921 = vset.pattern.permute.xlu0 0
    %922 = vperm.xlu0 %921, %v875
    %v923 = vpop.permute.xlu0 %922
    %924 = vset.pattern.permute.xlu0 0
    %925 = vperm.xlu0 %924, %v876
    %v926 = vpop.permute.xlu0 %925
    %927 = vset.pattern.permute.xlu0 0
    %928 = vperm.xlu0 %927, %v877
    %v929 = vpop.permute.xlu0 %928
    %930 = vset.pattern.permute.xlu0 0
    %931 = vperm.xlu0 %930, %v878
    %v932 = vpop.permute.xlu0 %931
    %933 = vset.pattern.permute.xlu0 0
    %934 = vperm.xlu0 %933, %v879
    %v935 = vpop.permute.xlu0 %934
    %936 = vset.pattern.permute.xlu0 0
    %937 = vperm.xlu0 %936, %v880
    %v938 = vpop.permute.xlu0 %937
    %939 = vset.pattern.permute.xlu0 0
    %940 = vperm.xlu0 %939, %v881
    %v941 = vpop.permute.xlu0 %940
    %942 = vset.pattern.permute.xlu0 0
    %943 = vperm.xlu0 %942, %v882
    %v944 = vpop.permute.xlu0 %943
    %945 = vset.pattern.permute.xlu0 0
    %946 = vperm.xlu0 %945, %v883
    %v947 = vpop.permute.xlu0 %946
    %948 = vset.pattern.permute.xlu0 0
    %949 = vperm.xlu0 %948, %v884
    %v950 = vpop.permute.xlu0 %949
    %vm951 = vcmp.eq.s32.totalorder %v905, %v902
    %vm952 = vcmp.eq.s32.totalorder %v908, %v902
    %vm953 = vcmp.eq.s32.totalorder %v911, %v902
    %vm954 = vcmp.eq.s32.totalorder %v914, %v902
    %vm955 = vcmp.eq.s32.totalorder %v917, %v902
    %vm956 = vcmp.eq.s32.totalorder %v920, %v902
    %vm957 = vcmp.eq.s32.totalorder %v923, %v902
    %vm958 = vcmp.eq.s32.totalorder %v926, %v902
    %vm959 = vcmp.eq.s32.totalorder %v929, %v902
    %vm960 = vcmp.eq.s32.totalorder %v932, %v902
    %vm961 = vcmp.eq.s32.totalorder %v935, %v902
    %vm962 = vcmp.eq.s32.totalorder %v938, %v902
    %vm963 = vcmp.eq.s32.totalorder %v941, %v902
    %vm964 = vcmp.eq.s32.totalorder %v944, %v902
    %vm965 = vcmp.eq.s32.totalorder %v947, %v902
    %vm966 = vcmp.eq.s32.totalorder %v950, %v902
    %967 = vset.pattern.permute.xlu0 0
    %968 = vperm.xlu0 %967, %v885
    %v969 = vpop.permute.xlu0 %968
    %971 = vset.pattern.permute.xlu0 0
    %972 = vperm.xlu0 %971, %v886
    %v973 = vpop.permute.xlu0 %972
    %975 = vset.pattern.permute.xlu0 0
    %976 = vperm.xlu0 %975, %v887
    %v977 = vpop.permute.xlu0 %976
    %979 = vset.pattern.permute.xlu0 0
    %980 = vperm.xlu0 %979, %v888
    %v981 = vpop.permute.xlu0 %980
    %983 = vset.pattern.permute.xlu0 0
    %984 = vperm.xlu0 %983, %v889
    %v985 = vpop.permute.xlu0 %984
    %987 = vset.pattern.permute.xlu0 0
    %988 = vperm.xlu0 %987, %v890
    %v989 = vpop.permute.xlu0 %988
    %991 = vset.pattern.permute.xlu0 0
    %992 = vperm.xlu0 %991, %v891
    %v993 = vpop.permute.xlu0 %992
    %995 = vset.pattern.permute.xlu0 0
    %996 = vperm.xlu0 %995, %v892
    %v997 = vpop.permute.xlu0 %996
    %999 = vset.pattern.permute.xlu0 0
    %1000 = vperm.xlu0 %999, %v893
    %v1001 = vpop.permute.xlu0 %1000
    %1003 = vset.pattern.permute.xlu0 0
    %1004 = vperm.xlu0 %1003, %v894
    %v1005 = vpop.permute.xlu0 %1004
    %1007 = vset.pattern.permute.xlu0 0
    %1008 = vperm.xlu0 %1007, %v895
    %v1009 = vpop.permute.xlu0 %1008
    %1011 = vset.pattern.permute.xlu0 0
    %1012 = vperm.xlu0 %1011, %v896
    %v1013 = vpop.permute.xlu0 %1012
    %1015 = vset.pattern.permute.xlu0 0
    %1016 = vperm.xlu0 %1015, %v897
    %v1017 = vpop.permute.xlu0 %1016
    %1019 = vset.pattern.permute.xlu0 0
    %1020 = vperm.xlu0 %1019, %v898
    %v1021 = vpop.permute.xlu0 %1020
    %1023 = vset.pattern.permute.xlu0 0
    %1024 = vperm.xlu0 %1023, %v899
    %v1025 = vpop.permute.xlu0 %1024
    %1027 = vset.pattern.permute.xlu0 0
    %1028 = vperm.xlu0 %1027, %v900
    %v1029 = vpop.permute.xlu0 %1028
    %v1031 = vsel %vm951, %v969, 0.0
    %v1032 = vsel %vm952, %v973, 0.0
    %v1033 = vsel %vm953, %v977, 0.0
    %v1034 = vsel %vm954, %v981, 0.0
    %v1035 = vsel %vm955, %v985, 0.0
    %v1036 = vsel %vm956, %v989, 0.0
    %v1037 = vsel %vm957, %v993, 0.0
    %v1038 = vsel %vm958, %v997, 0.0
    %v1039 = vsel %vm959, %v1001, 0.0
    %v1040 = vsel %vm960, %v1005, 0.0
    %v1041 = vsel %vm961, %v1009, 0.0
    %v1042 = vsel %vm962, %v1013, 0.0
    %v1043 = vsel %vm963, %v1017, 0.0
    %v1044 = vsel %vm964, %v1021, 0.0
    %v1045 = vsel %vm965, %v1025, 0.0
    %v1046 = vsel %vm966, %v1029, 0.0
    %vm1047 = vcmask 64512
    %v1049 = vsel %vm1047, %v1031, 0
    %v1052 = vsel %vm1047, %v1032, 0
    %v1055 = vsel %vm1047, %v1033, 0
    %v1058 = vsel %vm1047, %v1034, 0
    %v1061 = vsel %vm1047, %v1035, 0
    %v1064 = vsel %vm1047, %v1036, 0
    %v1067 = vsel %vm1047, %v1037, 0
    %v1070 = vsel %vm1047, %v1038, 0
    %1072 = vmatprep.subr.mxu0 0.0
    %1073 = vmatpush1.msra.mxu0 %v845
    %1074 = vmatprep.subr.mxu0 0.0
    %1075 = vmatpush1.msra.mxu0 0.0
    %1076 = vmatprep.subr.mxu0 0.0
    %1077 = vmatpush1.msra.mxu0 0.0
    %1078 = vmatprep.subr.mxu0 0.0
    %1079 = vmatpush1.msra.mxu0 0.0
    %1080 = vmatprep.subr.mxu0 0.0
    %1081 = vmatpush1.msra.mxu0 0.0
    %1082 = vmatprep.subr.mxu0 0.0
    %1083 = vmatpush1.msra.mxu0 0.0
    %1084 = vmatprep.subr.mxu0 0.0
    %1085 = vmatpush1.msra.mxu0 0.0
    %1086 = vmatprep.subr.mxu0 0.0
    %1087 = vmatpush1.msra.mxu0 0.0
    %1088 = vmatprep.subr.mxu0 0.0
    %1089 = vmatpush1.msra.mxu0 0.0
    %1090 = vmatprep.subr.mxu0 0.0
    %1091 = vmatpush1.msra.mxu0 0.0
    %1092 = vmatprep.subr.mxu0 0.0
    %1093 = vmatpush1.msra.mxu0 0.0
    %1094 = vmatprep.subr.mxu0 0.0
    %1095 = vmatpush1.msra.mxu0 0.0
    %1096 = vmatprep.subr.mxu0 0.0
    %1097 = vmatpush1.msra.mxu0 0.0
    %1098 = vmatprep.subr.mxu0 0.0
    %1099 = vmatpush1.msra.mxu0 0.0
    %1100 = vmatprep.subr.mxu0 0.0
    %1101 = vmatpush1.msra.mxu0 0.0
    %1102 = vmatprep.subr.mxu0 0.0
    %1103 = vmatpush1.msra.mxu0 0.0
    %1104 = vmatprep.subr.mxu0 0.0
    %1105 = vmatpush1.msra.mxu0 0.0
    %1106 = vmatprep.subr.mxu0 0.0
    %1107 = vmatpush1.msra.mxu0 0.0
    %1108 = vmatprep.subr.mxu0 0.0
    %1109 = vmatpush1.msra.mxu0 0.0
    %1110 = vmatprep.subr.mxu0 0.0
    %1111 = vmatpush1.msra.mxu0 0.0
    %1112 = vmatprep.subr.mxu0 0.0
    %1113 = vmatpush1.msra.mxu0 0.0
    %1114 = vmatprep.subr.mxu0 0.0
    %1115 = vmatpush1.msra.mxu0 0.0
    %1116 = vmatprep.subr.mxu0 0.0
    %1117 = vmatpush1.msra.mxu0 0.0
    %1118 = vmatprep.subr.mxu0 0.0
    %1119 = vmatpush1.msra.mxu0 0.0
    %1120 = vmatprep.subr.mxu0 0.0
    %1121 = vmatpush1.msra.mxu0 0.0
    %1122 = vmatprep.subr.mxu0 0.0
    %1123 = vmatpush1.msra.mxu0 0.0
    %1124 = vmatprep.subr.mxu0 0.0
    %1125 = vmatpush1.msra.mxu0 0.0
    %1126 = vmatprep.subr.mxu0 0.0
    %1127 = vmatpush1.msra.mxu0 0.0
    %1128 = vmatprep.subr.mxu0 0.0
    %1129 = vmatpush1.msra.mxu0 0.0
    %1130 = vmatprep.subr.mxu0 0.0
    %1131 = vmatpush1.msra.mxu0 0.0
    %1132 = vmatprep.subr.mxu0 0.0
    %1133 = vmatpush1.msra.mxu0 0.0
    %1134 = vmatprep.subr.mxu0 0.0
    %1135 = vmatpush1.msra.mxu0 0.0
    %1136 = vmatprep.mubr.f32.mxu0 0.0
    %1137 = vmatmul.mubr.f32.gmra.mrb[0].mxu0 %v1049
    %v1138 = vpop.f32.mrb[0].mxu0
    %v1139 = vadd.f32 0.0, %v1138
    %v1140 = vpop.f32.mrb[0].mxu0
    %1141 = vmatprep.mubr.f32.mxu0 0.0
    %1142 = vmatmul.mubr.f32.gmra.mrb[0].mxu0 %v1052
    %v1143 = vpop.f32.mrb[0].mxu0
    %v1144 = vadd.f32 0.0, %v1143
    %v1145 = vpop.f32.mrb[0].mxu0
    %1146 = vmatprep.mubr.f32.mxu0 0.0
    %1147 = vmatmul.mubr.f32.gmra.mrb[0].mxu0 %v1055
    %v1148 = vpop.f32.mrb[0].mxu0
    %v1149 = vadd.f32 0.0, %v1148
    %v1150 = vpop.f32.mrb[0].mxu0
    %1151 = vmatprep.mubr.f32.mxu0 0.0
    %1152 = vmatmul.mubr.f32.gmra.mrb[0].mxu0 %v1058
    %v1153 = vpop.f32.mrb[0].mxu0
    %v1154 = vadd.f32 0.0, %v1153
    %v1155 = vpop.f32.mrb[0].mxu0
    %1156 = vmatprep.mubr.f32.mxu0 0.0
    %1157 = vmatmul.mubr.f32.gmra.mrb[0].mxu0 %v1061
    %v1158 = vpop.f32.mrb[0].mxu0
    %v1159 = vadd.f32 0.0, %v1158
    %v1160 = vpop.f32.mrb[0].mxu0
    %1161 = vmatprep.mubr.f32.mxu0 0.0
    %1162 = vmatmul.mubr.f32.gmra.mrb[0].mxu0 %v1064
    %v1163 = vpop.f32.mrb[0].mxu0
    %v1164 = vadd.f32 0.0, %v1163
    %v1165 = vpop.f32.mrb[0].mxu0
    %1166 = vmatprep.mubr.f32.mxu0 0.0
    %1167 = vmatmul.mubr.f32.gmra.mrb[0].mxu0 %v1067
    %v1168 = vpop.f32.mrb[0].mxu0
    %v1169 = vadd.f32 0.0, %v1168
    %v1170 = vpop.f32.mrb[0].mxu0
    %1171 = vmatprep.mubr.f32.mxu0 0.0
    %1172 = vmatmul.mubr.f32.gmra.mrb[0].mxu0 %v1070
    %v1173 = vpop.f32.mrb[0].mxu0
    %v1174 = vadd.f32 0.0, %v1173
    %v1175 = vpop.f32.mrb[0].mxu0
    %1176 = vdwg.mxu0
    %v1178 = vsel %vm1047, %v1039, 0
    %v1181 = vsel %vm1047, %v1040, 0
    %v1184 = vsel %vm1047, %v1041, 0
    %v1187 = vsel %vm1047, %v1042, 0
    %v1190 = vsel %vm1047, %v1043, 0
    %v1193 = vsel %vm1047, %v1044, 0
    %v1196 = vsel %vm1047, %v1045, 0
    %v1199 = vsel %vm1047, %v1046, 0
    %1201 = vmatprep.subr.mxu0 0.0
    %1202 = vmatpush1.msra.mxu0 %v850
    %1203 = vmatprep.subr.mxu0 0.0
    %1204 = vmatpush1.msra.mxu0 0.0
    %1205 = vmatprep.subr.mxu0 0.0
    %1206 = vmatpush1.msra.mxu0 0.0
    %1207 = vmatprep.subr.mxu0 0.0
    %1208 = vmatpush1.msra.mxu0 0.0
    %1209 = vmatprep.subr.mxu0 0.0
    %1210 = vmatpush1.msra.mxu0 0.0
    %1211 = vmatprep.subr.mxu0 0.0
    %1212 = vmatpush1.msra.mxu0 0.0
    %1213 = vmatprep.subr.mxu0 0.0
    %1214 = vmatpush1.msra.mxu0 0.0
    %1215 = vmatprep.subr.mxu0 0.0
    %1216 = vmatpush1.msra.mxu0 0.0
    %1217 = vmatprep.subr.mxu0 0.0
    %1218 = vmatpush1.msra.mxu0 0.0
    %1219 = vmatprep.subr.mxu0 0.0
    %1220 = vmatpush1.msra.mxu0 0.0
    %1221 = vmatprep.subr.mxu0 0.0
    %1222 = vmatpush1.msra.mxu0 0.0
    %1223 = vmatprep.subr.mxu0 0.0
    %1224 = vmatpush1.msra.mxu0 0.0
    %1225 = vmatprep.subr.mxu0 0.0
    %1226 = vmatpush1.msra.mxu0 0.0
    %1227 = vmatprep.subr.mxu0 0.0
    %1228 = vmatpush1.msra.mxu0 0.0
    %1229 = vmatprep.subr.mxu0 0.0
    %1230 = vmatpush1.msra.mxu0 0.0
    %1231 = vmatprep.subr.mxu0 0.0
    %1232 = vmatpush1.msra.mxu0 0.0
    %1233 = vmatprep.subr.mxu0 0.0
    %1234 = vmatpush1.msra.mxu0 0.0
    %1235 = vmatprep.subr.mxu0 0.0
    %1236 = vmatpush1.msra.mxu0 0.0
    %1237 = vmatprep.subr.mxu0 0.0
    %1238 = vmatpush1.msra.mxu0 0.0
    %1239 = vmatprep.subr.mxu0 0.0
    %1240 = vmatpush1.msra.mxu0 0.0
    %1241 = vmatprep.subr.mxu0 0.0
    %1242 = vmatpush1.msra.mxu0 0.0
    %1243 = vmatprep.subr.mxu0 0.0
    %1244 = vmatpush1.msra.mxu0 0.0
    %1245 = vmatprep.subr.mxu0 0.0
    %1246 = vmatpush1.msra.mxu0 0.0
    %1247 = vmatprep.subr.mxu0 0.0
    %1248 = vmatpush1.msra.mxu0 0.0
    %1249 = vmatprep.subr.mxu0 0.0
    %1250 = vmatpush1.msra.mxu0 0.0
    %1251 = vmatprep.subr.mxu0 0.0
    %1252 = vmatpush1.msra.mxu0 0.0
    %1253 = vmatprep.subr.mxu0 0.0
    %1254 = vmatpush1.msra.mxu0 0.0
    %1255 = vmatprep.subr.mxu0 0.0
    %1256 = vmatpush1.msra.mxu0 0.0
    %1257 = vmatprep.subr.mxu0 0.0
    %1258 = vmatpush1.msra.mxu0 0.0
    %1259 = vmatprep.subr.mxu0 0.0
    %1260 = vmatpush1.msra.mxu0 0.0
    %1261 = vmatprep.subr.mxu0 0.0
    %1262 = vmatpush1.msra.mxu0 0.0
    %1263 = vmatprep.subr.mxu0 0.0
    %1264 = vmatpush1.msra.mxu0 0.0
    %1265 = vmatprep.mubr.f32.mxu0 0.0
    %1266 = vmatmul.mubr.f32.gmra.mrb[0].mxu0 %v1178
    %v1267 = vpop.f32.mrb[0].mxu0
    %v1268 = vadd.f32 0.0, %v1267
    %v1269 = vpop.f32.mrb[0].mxu0
    %1270 = vmatprep.mubr.f32.mxu0 0.0
    %1271 = vmatmul.mubr.f32.gmra.mrb[0].mxu0 %v1181
    %v1272 = vpop.f32.mrb[0].mxu0
    %v1273 = vadd.f32 0.0, %v1272
    %v1274 = vpop.f32.mrb[0].mxu0
    %1275 = vmatprep.mubr.f32.mxu0 0.0
    %1276 = vmatmul.mubr.f32.gmra.mrb[0].mxu0 %v1184
    %v1277 = vpop.f32.mrb[0].mxu0
    %v1278 = vadd.f32 0.0, %v1277
    %v1279 = vpop.f32.mrb[0].mxu0
    %1280 = vmatprep.mubr.f32.mxu0 0.0
    %1281 = vmatmul.mubr.f32.gmra.mrb[0].mxu0 %v1187
    %v1282 = vpop.f32.mrb[0].mxu0
    %v1283 = vadd.f32 0.0, %v1282
    %v1284 = vpop.f32.mrb[0].mxu0
    %1285 = vmatprep.mubr.f32.mxu0 0.0
    %1286 = vmatmul.mubr.f32.gmra.mrb[0].mxu0 %v1190
    %v1287 = vpop.f32.mrb[0].mxu0
    %v1288 = vadd.f32 0.0, %v1287
    %v1289 = vpop.f32.mrb[0].mxu0
    %1290 = vmatprep.mubr.f32.mxu0 0.0
    %1291 = vmatmul.mubr.f32.gmra.mrb[0].mxu0 %v1193
    %v1292 = vpop.f32.mrb[0].mxu0
    %v1293 = vadd.f32 0.0, %v1292
    %v1294 = vpop.f32.mrb[0].mxu0
    %1295 = vmatprep.mubr.f32.mxu0 0.0
    %1296 = vmatmul.mubr.f32.gmra.mrb[0].mxu0 %v1196
    %v1297 = vpop.f32.mrb[0].mxu0
    %v1298 = vadd.f32 0.0, %v1297
    %v1299 = vpop.f32.mrb[0].mxu0
    %1300 = vmatprep.mubr.f32.mxu0 0.0
    %1301 = vmatmul.mubr.f32.gmra.mrb[0].mxu0 %v1199
    %v1302 = vpop.f32.mrb[0].mxu0
    %v1303 = vadd.f32 0.0, %v1302
    %v1304 = vpop.f32.mrb[0].mxu0
    %1305 = vdwg.mxu0
    %v1306 = vmul.f32 %v1139, %v682
    %v1307 = vmul.f32 %v1144, %v687
    %v1308 = vmul.f32 %v1149, %v692
    %v1309 = vmul.f32 %v1154, %v697
    %v1310 = vmul.f32 %v1159, %v702
    %v1311 = vmul.f32 %v1164, %v707
    %v1312 = vmul.f32 %v1169, %v712
    %v1313 = vmul.f32 %v1174, %v717
    %v1314 = vmul.f32 %v1268, %v722
    %v1315 = vmul.f32 %v1273, %v727
    %v1316 = vmul.f32 %v1278, %v732
    %v1317 = vmul.f32 %v1283, %v737
    %v1318 = vmul.f32 %v1288, %v742
    %v1319 = vmul.f32 %v1293, %v747
    %v1320 = vmul.f32 %v1298, %v752
    %v1321 = vmul.f32 %v1303, %v757
    %v1322 = vrot.slane %v1306, 4
    %v1323 = vadd.f32 %v1306, %v1322
    %v1324 = vrot.slane %v1323, 2
    %v1325 = vadd.f32 %v1323, %v1324
    %v1326 = vrot.slane %v1325, 1
    %v1327 = vadd.f32 %v1325, %v1326
    %v1328 = vrot.slane %v1307, 4
    %v1329 = vadd.f32 %v1307, %v1328
    %v1330 = vrot.slane %v1329, 2
    %v1331 = vadd.f32 %v1329, %v1330
    %v1332 = vrot.slane %v1331, 1
    %v1333 = vadd.f32 %v1331, %v1332
    %v1334 = vrot.slane %v1308, 4
    %v1335 = vadd.f32 %v1308, %v1334
    %v1336 = vrot.slane %v1335, 2
    %v1337 = vadd.f32 %v1335, %v1336
    %v1338 = vrot.slane %v1337, 1
    %v1339 = vadd.f32 %v1337, %v1338
    %v1340 = vrot.slane %v1309, 4
    %v1341 = vadd.f32 %v1309, %v1340
    %v1342 = vrot.slane %v1341, 2
    %v1343 = vadd.f32 %v1341, %v1342
    %v1344 = vrot.slane %v1343, 1
    %v1345 = vadd.f32 %v1343, %v1344
    %v1346 = vrot.slane %v1310, 4
    %v1347 = vadd.f32 %v1310, %v1346
    %v1348 = vrot.slane %v1347, 2
    %v1349 = vadd.f32 %v1347, %v1348
    %v1350 = vrot.slane %v1349, 1
    %v1351 = vadd.f32 %v1349, %v1350
    %v1352 = vrot.slane %v1311, 4
    %v1353 = vadd.f32 %v1311, %v1352
    %v1354 = vrot.slane %v1353, 2
    %v1355 = vadd.f32 %v1353, %v1354
    %v1356 = vrot.slane %v1355, 1
    %v1357 = vadd.f32 %v1355, %v1356
    %v1358 = vrot.slane %v1312, 4
    %v1359 = vadd.f32 %v1312, %v1358
    %v1360 = vrot.slane %v1359, 2
    %v1361 = vadd.f32 %v1359, %v1360
    %v1362 = vrot.slane %v1361, 1
    %v1363 = vadd.f32 %v1361, %v1362
    %v1364 = vrot.slane %v1313, 4
    %v1365 = vadd.f32 %v1313, %v1364
    %v1366 = vrot.slane %v1365, 2
    %v1367 = vadd.f32 %v1365, %v1366
    %v1368 = vrot.slane %v1367, 1
    %v1369 = vadd.f32 %v1367, %v1368
    %v1370 = vrot.slane %v1314, 4
    %v1371 = vadd.f32 %v1314, %v1370
    %v1372 = vrot.slane %v1371, 2
    %v1373 = vadd.f32 %v1371, %v1372
    %v1374 = vrot.slane %v1373, 1
    %v1375 = vadd.f32 %v1373, %v1374
    %v1376 = vrot.slane %v1315, 4
    %v1377 = vadd.f32 %v1315, %v1376
    %v1378 = vrot.slane %v1377, 2
    %v1379 = vadd.f32 %v1377, %v1378
    %v1380 = vrot.slane %v1379, 1
    %v1381 = vadd.f32 %v1379, %v1380
    %v1382 = vrot.slane %v1316, 4
    %v1383 = vadd.f32 %v1316, %v1382
    %v1384 = vrot.slane %v1383, 2
    %v1385 = vadd.f32 %v1383, %v1384
    %v1386 = vrot.slane %v1385, 1
    %v1387 = vadd.f32 %v1385, %v1386
    %v1388 = vrot.slane %v1317, 4
    %v1389 = vadd.f32 %v1317, %v1388
    %v1390 = vrot.slane %v1389, 2
    %v1391 = vadd.f32 %v1389, %v1390
    %v1392 = vrot.slane %v1391, 1
    %v1393 = vadd.f32 %v1391, %v1392
    %v1394 = vrot.slane %v1318, 4
    %v1395 = vadd.f32 %v1318, %v1394
    %v1396 = vrot.slane %v1395, 2
    %v1397 = vadd.f32 %v1395, %v1396
    %v1398 = vrot.slane %v1397, 1
    %v1399 = vadd.f32 %v1397, %v1398
    %v1400 = vrot.slane %v1319, 4
    %v1401 = vadd.f32 %v1319, %v1400
    %v1402 = vrot.slane %v1401, 2
    %v1403 = vadd.f32 %v1401, %v1402
    %v1404 = vrot.slane %v1403, 1
    %v1405 = vadd.f32 %v1403, %v1404
    %v1406 = vrot.slane %v1320, 4
    %v1407 = vadd.f32 %v1320, %v1406
    %v1408 = vrot.slane %v1407, 2
    %v1409 = vadd.f32 %v1407, %v1408
    %v1410 = vrot.slane %v1409, 1
    %v1411 = vadd.f32 %v1409, %v1410
    %v1412 = vrot.slane %v1321, 4
    %v1413 = vadd.f32 %v1321, %v1412
    %v1414 = vrot.slane %v1413, 2
    %v1415 = vadd.f32 %v1413, %v1414
    %v1416 = vrot.slane %v1415, 1
    %v1417 = vadd.f32 %v1415, %v1416
    %v1418 = vld [vmem:[#allocation10] sm:$0xff]
    %v1419 = vld [vmem:[#allocation10 + $0x8] sm:$0xff]
    %v1420 = vld [vmem:[#allocation10 + $0x10] sm:$0xff]
    %v1421 = vld [vmem:[#allocation10 + $0x18] sm:$0xff]
    %v1422 = vld [vmem:[#allocation10 + $0x20] sm:$0xff]
    %v1423 = vld [vmem:[#allocation10 + $0x28] sm:$0xff]
    %v1424 = vld [vmem:[#allocation10 + $0x30] sm:$0xff]
    %v1425 = vld [vmem:[#allocation10 + $0x38] sm:$0xff]
    %v1426 = vld [vmem:[#allocation10 + $0x40] sm:$0xff]
    %v1427 = vld [vmem:[#allocation10 + $0x48] sm:$0xff]
    %v1428 = vld [vmem:[#allocation10 + $0x50] sm:$0xff]
    %v1429 = vld [vmem:[#allocation10 + $0x58] sm:$0xff]
    %v1430 = vld [vmem:[#allocation10 + $0x60] sm:$0xff]
    %v1431 = vld [vmem:[#allocation10 + $0x68] sm:$0xff]
    %v1432 = vld [vmem:[#allocation10 + $0x70] sm:$0xff]
    %v1433 = vld [vmem:[#allocation10 + $0x78] sm:$0xff]
    %v1434 = vld [vmem:[%s9] sm:$0x1]
    %v1436 = vlaneseq
    %v1437 = vshrl.u32 %v1436, 7
    %v1438 = vsub.s32 0, %v1437
    %v1439 = vrot.slane %v1434, %v1438
    %vm1457 = vcmask 1041409
    %v1458 = vsel %vm1457, %v1333, %v1327
    %vm1459 = vcmask 1042434
    %v1460 = vsel %vm1459, %v1339, %v1458
    %vm1461 = vcmask 1043459
    %v1462 = vsel %vm1461, %v1345, %v1460
    %vm1463 = vcmask 1044484
    %v1464 = vsel %vm1463, %v1351, %v1462
    %vm1465 = vcmask 1045509
    %v1466 = vsel %vm1465, %v1357, %v1464
    %vm1467 = vcmask 1046534
    %v1468 = vsel %vm1467, %v1363, %v1466
    %vm1469 = vcmask 1047559
    %v1470 = vsel %vm1469, %v1369, %v1468
    %v1471 = vsel %vm1457, %v1381, %v1375
    %v1472 = vsel %vm1459, %v1387, %v1471
    %v1473 = vsel %vm1461, %v1393, %v1472
    %v1474 = vsel %vm1463, %v1399, %v1473
    %v1475 = vsel %vm1465, %v1405, %v1474
    %v1476 = vsel %vm1467, %v1411, %v1475
    %v1477 = vsel %vm1469, %v1417, %v1476
    %1480 = vmatprep.subr.mxu0 0.0
    %1481 = vmatpush1.msra.mxu0 %v1418
    %1482 = vmatprep.subr.mxu0 0.0
    %1483 = vmatpush1.msra.mxu0 %v1419
    %1484 = vmatprep.subr.mxu0 0.0
    %1485 = vmatpush1.msra.mxu0 %v1420
    %1486 = vmatprep.subr.mxu0 0.0
    %1487 = vmatpush1.msra.mxu0 %v1421
    %1488 = vmatprep.subr.mxu0 0.0
    %1489 = vmatpush1.msra.mxu0 %v1422
    %1490 = vmatprep.subr.mxu0 0.0
    %1491 = vmatpush1.msra.mxu0 %v1423
    %1492 = vmatprep.subr.mxu0 0.0
    %1493 = vmatpush1.msra.mxu0 %v1424
    %1494 = vmatprep.subr.mxu0 0.0
    %1495 = vmatpush1.msra.mxu0 %v1425
    %1496 = vmatprep.subr.mxu0 0.0
    %1497 = vmatpush1.msra.mxu0 %v1426
    %1498 = vmatprep.subr.mxu0 0.0
    %1499 = vmatpush1.msra.mxu0 %v1427
    %1500 = vmatprep.subr.mxu0 0.0
    %1501 = vmatpush1.msra.mxu0 %v1428
    %1502 = vmatprep.subr.mxu0 0.0
    %1503 = vmatpush1.msra.mxu0 %v1429
    %1504 = vmatprep.subr.mxu0 0.0
    %1505 = vmatpush1.msra.mxu0 %v1430
    %1506 = vmatprep.subr.mxu0 0.0
    %1507 = vmatpush1.msra.mxu0 %v1431
    %1508 = vmatprep.subr.mxu0 0.0
    %1509 = vmatpush1.msra.mxu0 %v1432
    %1510 = vmatprep.subr.mxu0 0.0
    %1511 = vmatpush1.msra.mxu0 %v1433
    %1512 = vmatprep.subr.mxu0 0.0
    %1513 = vmatpush1.msra.mxu0 0.0
    %1514 = vmatprep.subr.mxu0 0.0
    %1515 = vmatpush1.msra.mxu0 0.0
    %1516 = vmatprep.subr.mxu0 0.0
    %1517 = vmatpush1.msra.mxu0 0.0
    %1518 = vmatprep.subr.mxu0 0.0
    %1519 = vmatpush1.msra.mxu0 0.0
    %1520 = vmatprep.subr.mxu0 0.0
    %1521 = vmatpush1.msra.mxu0 0.0
    %1522 = vmatprep.subr.mxu0 0.0
    %1523 = vmatpush1.msra.mxu0 0.0
    %1524 = vmatprep.subr.mxu0 0.0
    %1525 = vmatpush1.msra.mxu0 0.0
    %1526 = vmatprep.subr.mxu0 0.0
    %1527 = vmatpush1.msra.mxu0 0.0
    %1528 = vmatprep.subr.mxu0 0.0
    %1529 = vmatpush1.msra.mxu0 0.0
    %1530 = vmatprep.subr.mxu0 0.0
    %1531 = vmatpush1.msra.mxu0 0.0
    %1532 = vmatprep.subr.mxu0 0.0
    %1533 = vmatpush1.msra.mxu0 0.0
    %1534 = vmatprep.subr.mxu0 0.0
    %1535 = vmatpush1.msra.mxu0 0.0
    %1536 = vmatprep.subr.mxu0 0.0
    %1537 = vmatpush1.msra.mxu0 0.0
    %1538 = vmatprep.subr.mxu0 0.0
    %1539 = vmatpush1.msra.mxu0 0.0
    %1540 = vmatprep.subr.mxu0 0.0
    %1541 = vmatpush1.msra.mxu0 0.0
    %1542 = vmatprep.subr.mxu0 0.0
    %1543 = vmatpush1.msra.mxu0 0.0
    %1544 = vmatprep.mubr.f32.mxu0 0.0
    %1545 = vmatmul.mubr.f32.gmra.mrb[0].mxu0 %v1470
    %v1546 = vpop.f32.mrb[0].mxu0
    %v1547 = vadd.f32 %v1439, %v1546
    %v1548 = vpop.f32.mrb[0].mxu0
    %1549 = vmatprep.mubr.f32.mxu0 0.0
    %1550 = vmatmul.mubr.f32.gmra.mrb[0].mxu0 %v1477
    %v1551 = vpop.f32.mrb[0].mxu0
    %v1552 = vadd.f32 %v1439, %v1551
    %v1553 = vpop.f32.mrb[0].mxu0
    %1554 = vdwg.mxu0
    %v1555 = vmax.f32 %v1547, 0.0
    %v1556 = vmax.f32 %v1552, 0.0
    %vm1557 = vcmp.ne.f32.partialorder %v1547, %v1547
    %vm1558 = vcmp.ne.f32.partialorder %v1552, %v1552
    %v1559 = vadd.f32 %v1547, 0.0
    %v1560 = vadd.f32 %v1552, 0.0
    %v1561 = vand.u32 2147483647, %v1547
    %v1562 = vand.u32 2147483647, %v1552
    %v1563 = vsub.f32 0.0, %v1561
    %v1564 = vsub.f32 0.0, %v1562
    %v1565 = vmul.f32 %v1563, 1.442695
    %v1566 = vpow.pop %v1565
    %v1567 = vmul.f32 %v1564, 1.442695
    %v1568 = vpow.pop %v1567
    %v1569 = vadd.f32 %v1566, 1.0
    %v1570 = vlog2.pop %v1569
    %v1571 = vmul.f32 %v1570, 0.6931472
    %v1572 = vmul.f32 -0.5, %v1566
    %v1573 = vadd.f32 %v1572, 1.0
    %v1574 = vmul.f32 %v1573, %v1566
    %v1575 = vand.u32 2147483647, %v1566
    %vm1576 = vcmp.lt.f32.partialorder %v1575, 0.0004427343
    %v1577 = vsel %vm1576, %v1574, %v1571
    %v1578 = vadd.f32 %v1568, 1.0
    %v1579 = vlog2.pop %v1578
    %v1580 = vmul.f32 %v1579, 0.6931472
    %v1581 = vmul.f32 -0.5, %v1568
    %v1582 = vadd.f32 %v1581, 1.0
    %v1583 = vmul.f32 %v1582, %v1568
    %v1584 = vand.u32 2147483647, %v1568
    %vm1585 = vcmp.lt.f32.partialorder %v1584, 0.0004427343
    %v1586 = vsel %vm1585, %v1583, %v1580
    %v1587 = vadd.f32 %v1555, %v1577
    %v1588 = vadd.f32 %v1556, %v1586
    %v1589 = vsel %vm1557, %v1559, %v1587
    %v1590 = vsel %vm1558, %v1560, %v1588
    %v1591 = vsub.f32 %v1589, 0.6931472
    %v1592 = vsub.f32 %v1590, 0.6931472
    %1593 = vst [vmem:[#allocation11] sm:$0xff] %v1591
    %1594 = vst [vmem:[#allocation11 + $0x8] sm:$0xff] %v1592
    // Predicated region
    $region62: #{tpu_custom_call.1} parent=1 // pred_check
      _
    $region63: #{tpu_custom_call.1} parent=1 // pred_check_branch
      %1596 = sbr.rel (0) target = $region65
    $region64: #{tpu_custom_call.1} parent=1 // pred_region
      %s1598 = ssub.s32 256, 256
      %1599 = vsyncadd [#allocation4], %s1598
      %s1600 = sshll.u32 [#allocation11], 4
      %s1601 = int_to_ptr.vmem [resolvable:$true] %s1600
      %1606 = dma.vmem_to_hbm [thread:$0]  %s1601, 256, %s10, [#allocation4], 128, 128, 8
    $region65: #{tpu_custom_call.1} parent=1 // pred_fallthru
      _
    // Predicated region
    $region66: #{tpu_custom_call.1} parent=1 // pred_check
      _
    $region67: #{tpu_custom_call.1} parent=1 // pred_check_branch
      %1608 = sbr.rel (0) target = $region69
    $region68: #{tpu_custom_call.1} parent=1 // pred_region
      %1609 = dma.done [#allocation4], 256
    $region69: #{tpu_custom_call.1} parent=1 // pred_fallthru
      _
    %1610 = vsyncpa [#allocation3], 1
    %1611 = vsyncpa [#allocation6], 1
    %1612 = vsyncpa [#allocation9], 1
    %1613 = vsyncpa [#allocation4], 1

</llo_original>
